<compile_context>
chip_gen: v5e
topology: v5e:2x2
jax: 0.10.0
libtpu: 0.0.40
codegen_flags: <defaults>
</compile_context>

<pallas_src>
import jax
import jax.numpy as jnp
from jax.experimental import pallas as pl
from jax.experimental.pallas import tpu as pltpu


def _round_up(x, m):
    return ((x + m - 1) // m) * m


def _resident_spec(shape):
    """Whole-array block, constant index_map -> fetched once, stays in VMEM."""
    zeros = (0,) * len(shape)
    return pl.BlockSpec(shape, lambda *_: zeros)


def _bf16_activations_ok():
    """bf16 VPU/EUP (tanh) path exists on v6e / v7x; v5e and older are f32-only."""
    try:
        kind = jax.devices()[0].device_kind.lower()
    except Exception:
        return False
    return any(tag in kind for tag in ("v6", "v7", "7x"))


def _choose_tile_k(K, B):
    """Largest K tile (multiple of 128, <=4096) with <~12.5% padding waste and
    a >=2-step grid (so v7x can shard across both TensorCores)."""
    if K <= 128:
        return 128
    for cand in (4096, 2048, 1024, 512, 256, 128):
        k_pad = _round_up(K, cand)
        waste = (k_pad - K) / k_pad
        steps = B * (k_pad // cand)
        if waste <= 0.125 and steps >= 2:
            return cand
    return 128


# --------------------------------------------------------------------------- #
# Kernels
# --------------------------------------------------------------------------- #
def _branch_kernel(x_ref, w1, b1, w2, b2, w3, b3, w4, b4, tw4t, tb4, b0_ref,
                   brw_ref, bias_ref):
    """(TILE_B, b_dim) -> brW (TILE_B, 128), bias_eff (TILE_B, 1).

    Runs the 4-layer branch MLP and folds the trunk's 4th layer (tw4, tb4)
    into the branch side so the trunk hot loop never sees a 256-wide tensor.
    bf16 MXU matmuls with f32 accumulation; everything else f32.
    """
    f32, bf16 = jnp.float32, jnp.bfloat16
    h = jnp.tanh(jnp.dot(x_ref[...].astype(bf16), w1[...],
                         preferred_element_type=f32) + b1[...])
    h = jnp.tanh(jnp.dot(h.astype(bf16), w2[...],
                         preferred_element_type=f32) + b2[...])
    h = jnp.tanh(jnp.dot(h.astype(bf16), w3[...],
                         preferred_element_type=f32) + b3[...])
    branch = jnp.dot(h.astype(bf16), w4[...],
                     preferred_element_type=f32) + b4[...]           # (TILE_B, 256)
    # Fold: brW = branch @ tw4.T ; bias_eff = branch . tb4 + b0
    brw_ref[...] = jnp.dot(branch.astype(bf16), tw4t[...],
                           preferred_element_type=f32)                # (TILE_B, 128)
    bias_ref[...] = (jnp.sum(branch * tb4[...], axis=-1, keepdims=True)
                     + b0_ref[0, 0])                                  # (TILE_B, 1)


def _make_trunk_kernel(t_dim, act_dtype):
    """Trunk layers 1-3 on a (TILE_K, t_dim) tile + folded bilinear contraction."""
    f32, bf16 = jnp.float32, jnp.bfloat16

    def kernel(l_ref, brw_ref, bias_ref, w1, b1, w2, b2, w3, b3, out_ref):
        b = pl.program_id(0)
        lblk = l_ref[0]                                  # (TILE_K, t_dim) f32

        # Layer 1: contraction dim == t_dim (2) -> VPU broadcast-FMA, f32.
        w1v = w1[...]                                    # (t_dim, 128) f32
        acc = lblk[:, 0:1] * w1v[0:1, :]
        for d in range(1, t_dim):
            acc = acc + lblk[:, d:d + 1] * w1v[d:d + 1, :]
        g = jnp.tanh((acc + b1[...]).astype(act_dtype))

        # Layers 2-3: bf16 MXU matmuls, f32 accumulation, tanh in act_dtype
        # (bf16 on v6e/v7x -> EUP bf16 path, f32 on v5e).
        g = jnp.tanh((jnp.dot(g.astype(bf16), w2[...],
                              preferred_element_type=f32)
                      + b2[...]).astype(act_dtype))
        g = jnp.tanh((jnp.dot(g.astype(bf16), w3[...],
                              preferred_element_type=f32)
                      + b3[...]).astype(act_dtype))      # (TILE_K, 128)

        # Folded layer 4 + bilinear: 128-wide VPU multiply + XLU lane-reduce
        # against this batch's brW row, plus the SMEM per-batch bias.
        brw = brw_ref[pl.ds(b, 1), :]                    # (1, 128) f32
        res = jnp.sum(g * brw, axis=-1) + bias_ref[b, 0]  # (TILE_K,) f32
        out_ref[...] = res.reshape(1, 1, -1)

    return kernel


# --------------------------------------------------------------------------- #
# Wrapper
# --------------------------------------------------------------------------- #
def deeponet_forward(x, l, params):
    """x: (B, b_dim) f32, l: (B, K, t_dim) f32 -> (B, K, 1) f32."""
    (bw1, bb1, bw2, bb2, bw3, bb3, bw4, bb4,
     tw1, tb1, tw2, tb2, tw3, tb3, tw4, tb4, b0) = params
    B, b_dim = x.shape
    _, K, t_dim = l.shape
    H1 = tw1.shape[1]                      # 128
    H2 = bw4.shape[1]                      # 256

    bf16 = jnp.bfloat16
    bw1b, bw2b, bw3b, bw4b = (w.astype(bf16) for w in (bw1, bw2, bw3, bw4))
    tw2b, tw3b = tw2.astype(bf16), tw3.astype(bf16)
    tw4t_b = tw4.T.astype(bf16)            # (256, 128) -- folded onto branch side

    # ---- Branch MLP (+ trunk layer-4 fold): (B, b_dim) -> brW, bias_eff -----
    TILE_B = 256 if B >= 256 else _round_up(B, 8)
    B_pad = _round_up(B, TILE_B)
    x_pad = jnp.pad(x, ((0, B_pad - B), (0, 0)))
    br_weight_args = (bw1b, bb1, bw2b, bb2, bw3b, bb3, bw4b, bb4, tw4t_b, tb4)
    brw_pad, bias_pad = pl.pallas_call(
        _branch_kernel,
        out_shape=(jax.ShapeDtypeStruct((B_pad, H1), jnp.float32),
                   jax.ShapeDtypeStruct((B_pad, 1), jnp.float32)),
        grid=(B_pad // TILE_B,),
        in_specs=[pl.BlockSpec((TILE_B, b_dim), lambda i: (i, 0))]
                 + [_resident_spec(a.shape) for a in br_weight_args]
                 + [pl.BlockSpec(memory_space=pltpu.MemorySpace.SMEM)],
        out_specs=(pl.BlockSpec((TILE_B, H1), lambda i: (i, 0)),
                   pl.BlockSpec((TILE_B, 1), lambda i: (i, 0))),
        compiler_params=pltpu.CompilerParams(dimension_semantics=("parallel",)),
    )(x_pad, *br_weight_args, b0)

    # ---- Trunk layers 1-3 + folded bilinear, gridded over (batch, K tiles) --
    TILE_K = _choose_tile_k(K, B)
    K_pad = _round_up(K, TILE_K)
    l_pad = jnp.pad(l, ((0, 0), (0, K_pad - K), (0, 0)))

    act_dtype = bf16 if _bf16_activations_ok() else jnp.float32
    trunk_kernel = _make_trunk_kernel(t_dim, act_dtype)
    tr_weight_args = (tw1, tb1, tw2b, tb2, tw3b, tb3)

    out = pl.pallas_call(
        trunk_kernel,
        out_shape=jax.ShapeDtypeStruct((B, 1, K_pad), jnp.float32),
        grid=(B, K_pad // TILE_K),
        in_specs=[pl.BlockSpec((1, TILE_K, t_dim), lambda b, j: (b, j, 0)),
                  _resident_spec((B_pad, H1)),                       # brW, VMEM-resident
                  pl.BlockSpec(memory_space=pltpu.MemorySpace.SMEM)]  # bias_eff
                 + [_resident_spec(a.shape) for a in tr_weight_args],
        out_specs=pl.BlockSpec((1, 1, TILE_K), lambda b, j: (b, 0, j)),
        compiler_params=pltpu.CompilerParams(
            dimension_semantics=("parallel", "parallel")),
    )(l_pad, brw_pad, bias_pad, *tr_weight_args)

    return out[:, 0, :K][..., None]        # (B, K, 1); bias already added in-kernel


# --------------------------------------------------------------------------- #
# Params / reference
# --------------------------------------------------------------------------- #
def init_params(key, b_dim, t_dim):
    """Deterministic init mimicking PyTorch Linear default (uniform +-1/sqrt(fan_in)).
    Weights stored (in_features, out_features) so kernels compute h @ W + b."""
    dims_branch = [(b_dim, 128), (128, 128), (128, 128), (128, 256)]
    dims_trunk = [(t_dim, 128), (128, 128), (128, 128), (128, 256)]
    keys = jax.random.split(key, 16)
    params = []
    ki = 0
    for dims in (dims_branch, dims_trunk):
        for fin, fout in dims:
            bound = 1.0 / float(fin) ** 0.5
            W = jax.random.uniform(keys[ki], (fin, fout), jnp.float32, -bound, bound)
            ki += 1
            b = jax.random.uniform(keys[ki], (1, fout), jnp.float32, -bound, bound)
            ki += 1
            params.append(W)
            params.append(b)
    b0 = jnp.zeros((1, 1), jnp.float32)    # self.b = Parameter(torch.zeros(1))
    params.append(b0)
    return params


def deeponet_reference(x, l, params):
    """Pure-JAX f32 reference of the PyTorch forward."""
    (bw1, bb1, bw2, bb2, bw3, bb3, bw4, bb4,
     tw1, tb1, tw2, tb2, tw3, tb3, tw4, tb4, b0) = params
    h = jnp.tanh(x @ bw1 + bb1)
    h = jnp.tanh(h @ bw2 + bb2)
    h = jnp.tanh(h @ bw3 + bb3)
    branch = h @ bw4 + bb4                                  # (B, 256)
    g = jnp.tanh(l @ tw1 + tb1)
    g = jnp.tanh(g @ tw2 + tb2)
    g = jnp.tanh(g @ tw3 + tb3)
    trunk = g @ tw4 + tb4                                   # (B, K, 256)
    res = jnp.einsum('bi,bki->bk', branch, trunk)
    return res[..., None] + b0[0, 0]


if __name__ == "__main__":
    B, K = 2, 8
    b_dim, t_dim = 16, 2   # 2d-singular: branch over 16 sensors, trunk over 2D coords

    key = jax.random.PRNGKey(0)
    kx, kl, kp = jax.random.split(key, 3)
    x = jax.random.normal(kx, (B, b_dim), jnp.float32)
    l = jax.random.normal(kl, (B, K, t_dim), jnp.float32)
    params = init_params(kp, b_dim, t_dim)
    # PyTorch inits self.b to 0; set it nonzero here to exercise the bias path.
    params[-1] = jnp.full((1, 1), 0.25, jnp.float32)

    fwd = jax.jit(deeponet_forward)
    out = jax.block_until_ready(fwd(x, l, params))
    ref = deeponet_reference(x, l, params)
    assert out.shape == (B, K, 1)
    err = float(jnp.max(jnp.abs(out - ref)))
    # bf16 matmuls / bf16 tanh (f32 accumulation) -> looser tolerance than pure f32.
    assert jnp.allclose(out, ref, atol=5e-2, rtol=5e-2), f"max abs err = {err}"

    # Second shape: multiple K tiles + ragged padding exercised.
    K2 = 200
    l2 = jax.random.normal(jax.random.PRNGKey(1), (B, K2, t_dim), jnp.float32)
    out2 = jax.block_until_ready(fwd(x, l2, params))
    ref2 = deeponet_reference(x, l2, params)
    assert out2.shape == (B, K2, 1)
    err2 = float(jnp.max(jnp.abs(out2 - ref2)))
    assert jnp.allclose(out2, ref2, atol=5e-2, rtol=5e-2), f"max abs err = {err2}"

    print("KERNEL_OK")
</pallas_src>

<mosaic_0001>
module attributes {stable_mosaic.version = 11 : i64} {
  func.func @_branch_kernel(%arg0: i32, %arg1: memref<8x16xf32, #tpu.memory_space<vmem>>, %arg2: memref<16x128xbf16, #tpu.memory_space<vmem>>, %arg3: memref<1x128xf32, #tpu.memory_space<vmem>>, %arg4: memref<128x128xbf16, #tpu.memory_space<vmem>>, %arg5: memref<1x128xf32, #tpu.memory_space<vmem>>, %arg6: memref<128x128xbf16, #tpu.memory_space<vmem>>, %arg7: memref<1x128xf32, #tpu.memory_space<vmem>>, %arg8: memref<128x256xbf16, #tpu.memory_space<vmem>>, %arg9: memref<1x256xf32, #tpu.memory_space<vmem>>, %arg10: memref<256x128xbf16, #tpu.memory_space<vmem>>, %arg11: memref<1x256xf32, #tpu.memory_space<vmem>>, %arg12: memref<1x1xf32, #tpu.memory_space<smem>>, %arg13: memref<8x128xf32, #tpu.memory_space<vmem>>, %arg14: memref<8x1xf32, #tpu.memory_space<vmem>>) attributes {dimension_semantics = [#tpu.dimension_semantics<parallel>], iteration_bounds = array<i64: 1>, scalar_prefetch = 0 : i64, scratch_operands = 0 : i64, tpu.core_type = #tpu.core_type<tc>, window_params = [{transform_indices = @transform_0, window_bounds = array<i64: 8, 16>}, {pipeline_mode = #tpu.pipeline_mode<synchronous>, transform_indices = @transform_1, window_bounds = array<i64: 16, 128>}, {pipeline_mode = #tpu.pipeline_mode<synchronous>, transform_indices = @transform_2, window_bounds = array<i64: 1, 128>}, {pipeline_mode = #tpu.pipeline_mode<synchronous>, transform_indices = @transform_3, window_bounds = array<i64: 128, 128>}, {pipeline_mode = #tpu.pipeline_mode<synchronous>, transform_indices = @transform_4, window_bounds = array<i64: 1, 128>}, {pipeline_mode = #tpu.pipeline_mode<synchronous>, transform_indices = @transform_5, window_bounds = array<i64: 128, 128>}, {pipeline_mode = #tpu.pipeline_mode<synchronous>, transform_indices = @transform_6, window_bounds = array<i64: 1, 128>}, {pipeline_mode = #tpu.pipeline_mode<synchronous>, transform_indices = @transform_7, window_bounds = array<i64: 128, 256>}, {pipeline_mode = #tpu.pipeline_mode<synchronous>, transform_indices = @transform_8, window_bounds = array<i64: 1, 256>}, {pipeline_mode = #tpu.pipeline_mode<synchronous>, transform_indices = @transform_9, window_bounds = array<i64: 256, 128>}, {pipeline_mode = #tpu.pipeline_mode<synchronous>, transform_indices = @transform_10, window_bounds = array<i64: 1, 256>}, {transform_indices = @transform_11, window_bounds = array<i64: 1, 1>}, {transform_indices = @transform_12, window_bounds = array<i64: 8, 128>}, {transform_indices = @transform_13, window_bounds = array<i64: 8, 1>}]} {
    %c0 = arith.constant 0 : index
    %c0_0 = arith.constant 0 : index
    %0 = vector.load %arg1[%c0, %c0_0] : memref<8x16xf32, #tpu.memory_space<vmem>>, vector<8x16xf32>
    %1 = arith.truncf %0 : vector<8x16xf32> to vector<8x16xbf16>
    %c0_1 = arith.constant 0 : index
    %c0_2 = arith.constant 0 : index
    %2 = vector.load %arg2[%c0_1, %c0_2] : memref<16x128xbf16, #tpu.memory_space<vmem>>, vector<16x128xbf16>
    %cst = arith.constant dense<0.000000e+00> : vector<8x128xf32>
    %3 = tpu.matmul %1, %2, %cst {dimension_numbers = #tpu.dot_dimension_numbers<[1], [0], [0], [1], [0, 0, 1, 1], [], []>} : vector<8x16xbf16>, vector<16x128xbf16>, vector<8x128xf32> -> vector<8x128xf32>
    %c0_3 = arith.constant 0 : index
    %c0_4 = arith.constant 0 : index
    %4 = vector.load %arg3[%c0_3, %c0_4] : memref<1x128xf32, #tpu.memory_space<vmem>>, vector<1x128xf32>
    %5 = vector.broadcast %4 : vector<1x128xf32> to vector<8x128xf32>
    %6 = arith.addf %3, %5 : vector<8x128xf32>
    %7 = math.tanh %6 : vector<8x128xf32>
    %8 = arith.truncf %7 : vector<8x128xf32> to vector<8x128xbf16>
    %c0_5 = arith.constant 0 : index
    %c0_6 = arith.constant 0 : index
    %9 = vector.load %arg4[%c0_5, %c0_6] : memref<128x128xbf16, #tpu.memory_space<vmem>>, vector<128x128xbf16>
    %cst_7 = arith.constant dense<0.000000e+00> : vector<8x128xf32>
    %10 = tpu.matmul %8, %9, %cst_7 {dimension_numbers = #tpu.dot_dimension_numbers<[1], [0], [0], [1], [0, 0, 1, 1], [], []>} : vector<8x128xbf16>, vector<128x128xbf16>, vector<8x128xf32> -> vector<8x128xf32>
    %c0_8 = arith.constant 0 : index
    %c0_9 = arith.constant 0 : index
    %11 = vector.load %arg5[%c0_8, %c0_9] : memref<1x128xf32, #tpu.memory_space<vmem>>, vector<1x128xf32>
    %12 = vector.broadcast %11 : vector<1x128xf32> to vector<8x128xf32>
    %13 = arith.addf %10, %12 : vector<8x128xf32>
    %14 = math.tanh %13 : vector<8x128xf32>
    %15 = arith.truncf %14 : vector<8x128xf32> to vector<8x128xbf16>
    %c0_10 = arith.constant 0 : index
    %c0_11 = arith.constant 0 : index
    %16 = vector.load %arg6[%c0_10, %c0_11] : memref<128x128xbf16, #tpu.memory_space<vmem>>, vector<128x128xbf16>
    %cst_12 = arith.constant dense<0.000000e+00> : vector<8x128xf32>
    %17 = tpu.matmul %15, %16, %cst_12 {dimension_numbers = #tpu.dot_dimension_numbers<[1], [0], [0], [1], [0, 0, 1, 1], [], []>} : vector<8x128xbf16>, vector<128x128xbf16>, vector<8x128xf32> -> vector<8x128xf32>
    %c0_13 = arith.constant 0 : index
    %c0_14 = arith.constant 0 : index
    %18 = vector.load %arg7[%c0_13, %c0_14] : memref<1x128xf32, #tpu.memory_space<vmem>>, vector<1x128xf32>
    %19 = vector.broadcast %18 : vector<1x128xf32> to vector<8x128xf32>
    %20 = arith.addf %17, %19 : vector<8x128xf32>
    %21 = math.tanh %20 : vector<8x128xf32>
    %22 = arith.truncf %21 : vector<8x128xf32> to vector<8x128xbf16>
    %c0_15 = arith.constant 0 : index
    %c0_16 = arith.constant 0 : index
    %23 = vector.load %arg8[%c0_15, %c0_16] : memref<128x256xbf16, #tpu.memory_space<vmem>>, vector<128x256xbf16>
    %cst_17 = arith.constant dense<0.000000e+00> : vector<8x256xf32>
    %24 = tpu.matmul %22, %23, %cst_17 {dimension_numbers = #tpu.dot_dimension_numbers<[1], [0], [0], [1], [0, 0, 1, 1], [], []>} : vector<8x128xbf16>, vector<128x256xbf16>, vector<8x256xf32> -> vector<8x256xf32>
    %c0_18 = arith.constant 0 : index
    %c0_19 = arith.constant 0 : index
    %25 = vector.load %arg9[%c0_18, %c0_19] : memref<1x256xf32, #tpu.memory_space<vmem>>, vector<1x256xf32>
    %26 = vector.broadcast %25 : vector<1x256xf32> to vector<8x256xf32>
    %27 = arith.addf %24, %26 : vector<8x256xf32>
    %28 = arith.truncf %27 : vector<8x256xf32> to vector<8x256xbf16>
    %c0_20 = arith.constant 0 : index
    %c0_21 = arith.constant 0 : index
    %29 = vector.load %arg10[%c0_20, %c0_21] : memref<256x128xbf16, #tpu.memory_space<vmem>>, vector<256x128xbf16>
    %cst_22 = arith.constant dense<0.000000e+00> : vector<8x128xf32>
    %30 = tpu.matmul %28, %29, %cst_22 {dimension_numbers = #tpu.dot_dimension_numbers<[1], [0], [0], [1], [0, 0, 1, 1], [], []>} : vector<8x256xbf16>, vector<256x128xbf16>, vector<8x128xf32> -> vector<8x128xf32>
    %c0_23 = arith.constant 0 : index
    %c0_24 = arith.constant 0 : index
    %31 = vector.load %arg13[%c0_23, %c0_24] : memref<8x128xf32, #tpu.memory_space<vmem>>, vector<8x128xf32>
    tpu.vector_store %arg13[%c0_23, %c0_24], %30 {strides = array<i32>} : memref<8x128xf32, #tpu.memory_space<vmem>>, vector<8x128xf32>,
    %c0_25 = arith.constant 0 : index
    %c0_26 = arith.constant 0 : index
    %32 = vector.load %arg11[%c0_25, %c0_26] : memref<1x256xf32, #tpu.memory_space<vmem>>, vector<1x256xf32>
    %33 = vector.broadcast %32 : vector<1x256xf32> to vector<8x256xf32>
    %34 = arith.mulf %27, %33 : vector<8x256xf32>
    %cst_27 = arith.constant dense<0.000000e+00> : vector<8xf32>
    %35 = vector.multi_reduction <add>, %34, %cst_27 [1] : vector<8x256xf32> to vector<8xf32>
    %36 = vector.shape_cast %35 : vector<8xf32> to vector<8x1xf32>
    %c0_28 = arith.constant 0 : index
    %c0_29 = arith.constant 0 : index
    %37 = memref.load %arg12[%c0_28, %c0_29] : memref<1x1xf32, #tpu.memory_space<smem>>
    %38 = vector.broadcast %37 : f32 to vector<8x1xf32>
    %39 = arith.addf %36, %38 : vector<8x1xf32>
    %c0_30 = arith.constant 0 : index
    %c0_31 = arith.constant 0 : index
    %40 = vector.load %arg14[%c0_30, %c0_31] : memref<8x1xf32, #tpu.memory_space<vmem>>, vector<8x1xf32>
    tpu.vector_store %arg14[%c0_30, %c0_31], %39 {strides = array<i32>} : memref<8x1xf32, #tpu.memory_space<vmem>>, vector<8x1xf32>,
    return
  }
  func.func @transform_0(%arg0: i32) -> (i32, i32) {
    %c0_i32 = arith.constant 0 : i32
    %c0_i32_0 = arith.constant 0 : i32
    return %arg0, %c0_i32 : i32, i32
  }
  func.func @transform_1(%arg0: i32) -> (i32, i32) {
    %c0_i32 = arith.constant 0 : i32
    %c0_i32_0 = arith.constant 0 : i32
    %c0_i32_1 = arith.constant 0 : i32
    return %c0_i32, %c0_i32_0 : i32, i32
  }
  func.func @transform_2(%arg0: i32) -> (i32, i32) {
    %c0_i32 = arith.constant 0 : i32
    %c0_i32_0 = arith.constant 0 : i32
    %c0_i32_1 = arith.constant 0 : i32
    return %c0_i32, %c0_i32_0 : i32, i32
  }
  func.func @transform_3(%arg0: i32) -> (i32, i32) {
    %c0_i32 = arith.constant 0 : i32
    %c0_i32_0 = arith.constant 0 : i32
    %c0_i32_1 = arith.constant 0 : i32
    return %c0_i32, %c0_i32_0 : i32, i32
  }
  func.func @transform_4(%arg0: i32) -> (i32, i32) {
    %c0_i32 = arith.constant 0 : i32
    %c0_i32_0 = arith.constant 0 : i32
    %c0_i32_1 = arith.constant 0 : i32
    return %c0_i32, %c0_i32_0 : i32, i32
  }
  func.func @transform_5(%arg0: i32) -> (i32, i32) {
    %c0_i32 = arith.constant 0 : i32
    %c0_i32_0 = arith.constant 0 : i32
    %c0_i32_1 = arith.constant 0 : i32
    return %c0_i32, %c0_i32_0 : i32, i32
  }
  func.func @transform_6(%arg0: i32) -> (i32, i32) {
    %c0_i32 = arith.constant 0 : i32
    %c0_i32_0 = arith.constant 0 : i32
    %c0_i32_1 = arith.constant 0 : i32
    return %c0_i32, %c0_i32_0 : i32, i32
  }
  func.func @transform_7(%arg0: i32) -> (i32, i32) {
    %c0_i32 = arith.constant 0 : i32
    %c0_i32_0 = arith.constant 0 : i32
    %c0_i32_1 = arith.constant 0 : i32
    return %c0_i32, %c0_i32_0 : i32, i32
  }
  func.func @transform_8(%arg0: i32) -> (i32, i32) {
    %c0_i32 = arith.constant 0 : i32
    %c0_i32_0 = arith.constant 0 : i32
    %c0_i32_1 = arith.constant 0 : i32
    return %c0_i32, %c0_i32_0 : i32, i32
  }
  func.func @transform_9(%arg0: i32) -> (i32, i32) {
    %c0_i32 = arith.constant 0 : i32
    %c0_i32_0 = arith.constant 0 : i32
    %c0_i32_1 = arith.constant 0 : i32
    return %c0_i32, %c0_i32_0 : i32, i32
  }
  func.func @transform_10(%arg0: i32) -> (i32, i32) {
    %c0_i32 = arith.constant 0 : i32
    %c0_i32_0 = arith.constant 0 : i32
    %c0_i32_1 = arith.constant 0 : i32
    return %c0_i32, %c0_i32_0 : i32, i32
  }
  func.func @transform_11(%arg0: i32) -> (i32, i32) {
    %c0_i32 = arith.constant 0 : i32
    %c0_i32_0 = arith.constant 0 : i32
    %c0_i32_1 = arith.constant 0 : i32
    return %c0_i32, %c0_i32_0 : i32, i32
  }
  func.func @transform_12(%arg0: i32) -> (i32, i32) {
    %c0_i32 = arith.constant 0 : i32
    %c0_i32_0 = arith.constant 0 : i32
    return %arg0, %c0_i32 : i32, i32
  }
  func.func @transform_13(%arg0: i32) -> (i32, i32) {
    %c0_i32 = arith.constant 0 : i32
    %c0_i32_0 = arith.constant 0 : i32
    return %arg0, %c0_i32 : i32, i32
  }
}

module attributes {stable_mosaic.version = 11 : i64} {
  func.func @kernel(%arg0: i32, %arg1: i32, %arg2: memref<1x128x2xf32, #tpu.memory_space<vmem>>, %arg3: memref<8x128xf32, #tpu.memory_space<vmem>>, %arg4: memref<8x1xf32, #tpu.memory_space<smem>>, %arg5: memref<2x128xf32, #tpu.memory_space<vmem>>, %arg6: memref<1x128xf32, #tpu.memory_space<vmem>>, %arg7: memref<128x128xbf16, #tpu.memory_space<vmem>>, %arg8: memref<1x128xf32, #tpu.memory_space<vmem>>, %arg9: memref<128x128xbf16, #tpu.memory_space<vmem>>, %arg10: memref<1x128xf32, #tpu.memory_space<vmem>>, %arg11: memref<1x1x128xf32, #tpu.memory_space<vmem>>) attributes {dimension_semantics = [#tpu.dimension_semantics<parallel>, #tpu.dimension_semantics<parallel>], iteration_bounds = array<i64: 2, 1>, scalar_prefetch = 0 : i64, scratch_operands = 0 : i64, tpu.core_type = #tpu.core_type<tc>, window_params = [{transform_indices = @transform_0, window_bounds = array<i64: 1, 128, 2>}, {pipeline_mode = #tpu.pipeline_mode<synchronous>, transform_indices = @transform_1, window_bounds = array<i64: 8, 128>}, {transform_indices = @transform_2, window_bounds = array<i64: 8, 1>}, {pipeline_mode = #tpu.pipeline_mode<synchronous>, transform_indices = @transform_3, window_bounds = array<i64: 2, 128>}, {pipeline_mode = #tpu.pipeline_mode<synchronous>, transform_indices = @transform_4, window_bounds = array<i64: 1, 128>}, {pipeline_mode = #tpu.pipeline_mode<synchronous>, transform_indices = @transform_5, window_bounds = array<i64: 128, 128>}, {pipeline_mode = #tpu.pipeline_mode<synchronous>, transform_indices = @transform_6, window_bounds = array<i64: 1, 128>}, {pipeline_mode = #tpu.pipeline_mode<synchronous>, transform_indices = @transform_7, window_bounds = array<i64: 128, 128>}, {pipeline_mode = #tpu.pipeline_mode<synchronous>, transform_indices = @transform_8, window_bounds = array<i64: 1, 128>}, {transform_indices = @transform_9, window_bounds = array<i64: 1, 1, 128>}]} {
    %c0 = arith.constant 0 : index
    %c0_0 = arith.constant 0 : index
    %c0_1 = arith.constant 0 : index
    %0 = vector.load %arg2[%c0, %c0_0, %c0_1] : memref<1x128x2xf32, #tpu.memory_space<vmem>>, vector<1x128x2xf32>
    %1 = vector.shape_cast %0 : vector<1x128x2xf32> to vector<128x2xf32>
    %c0_2 = arith.constant 0 : index
    %c0_3 = arith.constant 0 : index
    %2 = vector.load %arg5[%c0_2, %c0_3] : memref<2x128xf32, #tpu.memory_space<vmem>>, vector<2x128xf32>
    %3 = vector.extract_strided_slice %1 {offsets = [0, 0], sizes = [128, 1], strides = [1, 1]} : vector<128x2xf32> to vector<128x1xf32>
    %4 = vector.extract_strided_slice %2 {offsets = [0, 0], sizes = [1, 128], strides = [1, 1]} : vector<2x128xf32> to vector<1x128xf32>
    %5 = vector.broadcast %3 : vector<128x1xf32> to vector<128x128xf32>
    %6 = vector.broadcast %4 : vector<1x128xf32> to vector<128x128xf32>
    %7 = arith.mulf %5, %6 : vector<128x128xf32>
    %8 = vector.extract_strided_slice %1 {offsets = [0, 1], sizes = [128, 1], strides = [1, 1]} : vector<128x2xf32> to vector<128x1xf32>
    %9 = vector.extract_strided_slice %2 {offsets = [1, 0], sizes = [1, 128], strides = [1, 1]} : vector<2x128xf32> to vector<1x128xf32>
    %10 = vector.broadcast %8 : vector<128x1xf32> to vector<128x128xf32>
    %11 = vector.broadcast %9 : vector<1x128xf32> to vector<128x128xf32>
    %12 = arith.mulf %10, %11 : vector<128x128xf32>
    %13 = arith.addf %7, %12 : vector<128x128xf32>
    %c0_4 = arith.constant 0 : index
    %c0_5 = arith.constant 0 : index
    %14 = vector.load %arg6[%c0_4, %c0_5] : memref<1x128xf32, #tpu.memory_space<vmem>>, vector<1x128xf32>
    %15 = vector.broadcast %14 : vector<1x128xf32> to vector<128x128xf32>
    %16 = arith.addf %13, %15 : vector<128x128xf32>
    %17 = math.tanh %16 : vector<128x128xf32>
    %18 = arith.truncf %17 : vector<128x128xf32> to vector<128x128xbf16>
    %c0_6 = arith.constant 0 : index
    %c0_7 = arith.constant 0 : index
    %19 = vector.load %arg7[%c0_6, %c0_7] : memref<128x128xbf16, #tpu.memory_space<vmem>>, vector<128x128xbf16>
    %cst = arith.constant dense<0.000000e+00> : vector<128x128xf32>
    %20 = tpu.matmul %18, %19, %cst {dimension_numbers = #tpu.dot_dimension_numbers<[1], [0], [0], [1], [0, 0, 1, 1], [], []>} : vector<128x128xbf16>, vector<128x128xbf16>, vector<128x128xf32> -> vector<128x128xf32>
    %c0_8 = arith.constant 0 : index
    %c0_9 = arith.constant 0 : index
    %21 = vector.load %arg8[%c0_8, %c0_9] : memref<1x128xf32, #tpu.memory_space<vmem>>, vector<1x128xf32>
    %22 = vector.broadcast %21 : vector<1x128xf32> to vector<128x128xf32>
    %23 = arith.addf %20, %22 : vector<128x128xf32>
    %24 = math.tanh %23 : vector<128x128xf32>
    %25 = arith.truncf %24 : vector<128x128xf32> to vector<128x128xbf16>
    %c0_10 = arith.constant 0 : index
    %c0_11 = arith.constant 0 : index
    %26 = vector.load %arg9[%c0_10, %c0_11] : memref<128x128xbf16, #tpu.memory_space<vmem>>, vector<128x128xbf16>
    %cst_12 = arith.constant dense<0.000000e+00> : vector<128x128xf32>
    %27 = tpu.matmul %25, %26, %cst_12 {dimension_numbers = #tpu.dot_dimension_numbers<[1], [0], [0], [1], [0, 0, 1, 1], [], []>} : vector<128x128xbf16>, vector<128x128xbf16>, vector<128x128xf32> -> vector<128x128xf32>
    %c0_13 = arith.constant 0 : index
    %c0_14 = arith.constant 0 : index
    %28 = vector.load %arg10[%c0_13, %c0_14] : memref<1x128xf32, #tpu.memory_space<vmem>>, vector<1x128xf32>
    %29 = vector.broadcast %28 : vector<1x128xf32> to vector<128x128xf32>
    %30 = arith.addf %27, %29 : vector<128x128xf32>
    %31 = math.tanh %30 : vector<128x128xf32>
    %32 = arith.index_cast %arg0 : i32 to index
    %c0_15 = arith.constant 0 : index
    %33 = vector.load %arg3[%32, %c0_15] : memref<8x128xf32, #tpu.memory_space<vmem>>, vector<1x128xf32>
    %34 = vector.broadcast %33 : vector<1x128xf32> to vector<128x128xf32>
    %35 = arith.mulf %31, %34 : vector<128x128xf32>
    %cst_16 = arith.constant dense<0.000000e+00> : vector<128xf32>
    %36 = vector.multi_reduction <add>, %35, %cst_16 [1] : vector<128x128xf32> to vector<128xf32>
    %37 = arith.index_cast %arg0 : i32 to index
    %c0_17 = arith.constant 0 : index
    %38 = memref.load %arg4[%37, %c0_17] : memref<8x1xf32, #tpu.memory_space<smem>>
    %39 = vector.broadcast %38 : f32 to vector<128xf32>
    %40 = arith.addf %36, %39 : vector<128xf32>
    %41 = vector.shape_cast %40 : vector<128xf32> to vector<1x1x128xf32>
    %c0_18 = arith.constant 0 : index
    %c0_19 = arith.constant 0 : index
    %c0_20 = arith.constant 0 : index
    %42 = vector.load %arg11[%c0_18, %c0_19, %c0_20] : memref<1x1x128xf32, #tpu.memory_space<vmem>>, vector<1x1x128xf32>
    tpu.vector_store %arg11[%c0_18, %c0_19, %c0_20], %41 {strides = array<i32>} : memref<1x1x128xf32, #tpu.memory_space<vmem>>, vector<1x1x128xf32>,
    return
  }
  func.func @transform_0(%arg0: i32, %arg1: i32) -> (i32, i32, i32) {
    %c0_i32 = arith.constant 0 : i32
    %c0_i32_0 = arith.constant 0 : i32
    return %arg0, %arg1, %c0_i32 : i32, i32, i32
  }
  func.func @transform_1(%arg0: i32, %arg1: i32) -> (i32, i32) {
    %c0_i32 = arith.constant 0 : i32
    %c0_i32_0 = arith.constant 0 : i32
    %c0_i32_1 = arith.constant 0 : i32
    return %c0_i32, %c0_i32_0 : i32, i32
  }
  func.func @transform_2(%arg0: i32, %arg1: i32) -> (i32, i32) {
    %c0_i32 = arith.constant 0 : i32
    %c0_i32_0 = arith.constant 0 : i32
    %c0_i32_1 = arith.constant 0 : i32
    return %c0_i32, %c0_i32_0 : i32, i32
  }
  func.func @transform_3(%arg0: i32, %arg1: i32) -> (i32, i32) {
    %c0_i32 = arith.constant 0 : i32
    %c0_i32_0 = arith.constant 0 : i32
    %c0_i32_1 = arith.constant 0 : i32
    return %c0_i32, %c0_i32_0 : i32, i32
  }
  func.func @transform_4(%arg0: i32, %arg1: i32) -> (i32, i32) {
    %c0_i32 = arith.constant 0 : i32
    %c0_i32_0 = arith.constant 0 : i32
    %c0_i32_1 = arith.constant 0 : i32
    return %c0_i32, %c0_i32_0 : i32, i32
  }
  func.func @transform_5(%arg0: i32, %arg1: i32) -> (i32, i32) {
    %c0_i32 = arith.constant 0 : i32
    %c0_i32_0 = arith.constant 0 : i32
    %c0_i32_1 = arith.constant 0 : i32
    return %c0_i32, %c0_i32_0 : i32, i32
  }
  func.func @transform_6(%arg0: i32, %arg1: i32) -> (i32, i32) {
    %c0_i32 = arith.constant 0 : i32
    %c0_i32_0 = arith.constant 0 : i32
    %c0_i32_1 = arith.constant 0 : i32
    return %c0_i32, %c0_i32_0 : i32, i32
  }
  func.func @transform_7(%arg0: i32, %arg1: i32) -> (i32, i32) {
    %c0_i32 = arith.constant 0 : i32
    %c0_i32_0 = arith.constant 0 : i32
    %c0_i32_1 = arith.constant 0 : i32
    return %c0_i32, %c0_i32_0 : i32, i32
  }
  func.func @transform_8(%arg0: i32, %arg1: i32) -> (i32, i32) {
    %c0_i32 = arith.constant 0 : i32
    %c0_i32_0 = arith.constant 0 : i32
    %c0_i32_1 = arith.constant 0 : i32
    return %c0_i32, %c0_i32_0 : i32, i32
  }
  func.func @transform_9(%arg0: i32, %arg1: i32) -> (i32, i32, i32) {
    %c0_i32 = arith.constant 0 : i32
    %c0_i32_0 = arith.constant 0 : i32
    return %arg0, %c0_i32, %arg1 : i32, i32, i32
  }
}

</mosaic_0001>

<llo_original>
// kernel: deeponet_forward.3
$region0: #{deeponet_forward.3}
  #allocation0 [shape = 'u32[]', space=smem, size = 0x4, offset = 0x4, fixed_abs, tag = 'smem constant byte address 0x4 - core index']
  #allocation1 [shape = 'u32[72,128]{1,0:T(1,128)}', space=vmem, size = 0x9000, scoped, tag = 'internal scratch']
  %s0 = inlined_call_operand.vmem [shape: f32[2,128,2], index: 0, kind: input, shape index: {}]
  %s1 = inlined_call_operand.vmem [shape: f32[8,128], index: 1, kind: input, shape index: {}]
  %s2 = inlined_call_operand.vmem [shape: f32[8,1], index: 2, kind: input, shape index: {}]
  %s3 = inlined_call_operand.vmem [shape: f32[2,128], index: 3, kind: input, shape index: {}]
  %s4 = inlined_call_operand.vmem [shape: f32[1,128], index: 4, kind: input, shape index: {}]
  %s5 = inlined_call_operand.vmem [shape: bf16[128,128], index: 5, kind: input, shape index: {}]
  %s6 = inlined_call_operand.vmem [shape: f32[1,128], index: 6, kind: input, shape index: {}]
  %s7 = inlined_call_operand.vmem [shape: bf16[128,128], index: 7, kind: input, shape index: {}]
  %s8 = inlined_call_operand.vmem [shape: f32[1,128], index: 8, kind: input, shape index: {}]
  %s9 = inlined_call_operand.vmem [shape: f32[2,1,128], index: 9, kind: output, shape index: {}]
  %s10 = sld [smem:[#allocation0]]
  $region73: #{deeponet_forward.3} parent=0
    _
  %s12 = ssub.s32 1, %s10
  %s13 = scalar_select 0, %s12, %s10
  $region1: #{deeponet_forward.3} parent=0
    #allocation2 [shape = 'u8[4096]{0}', space=smem, size = 0x1000, scoped, tag = 'input window, operand 2, single buffered']
    #allocation3 [shape = 's32[2]{0}', space=sflag, size = 0x8, scoped, tag = 'scoped memory for deeponet_forward.3']
    %14 = vsyncpa [#allocation3], 0
    loop: start=0, step=1, limit=4
    $region2: #{deeponet_forward.3} parent=1 // loop_pre_header
      _
    $region3: #{deeponet_forward.3} parent=1 // loop_header
      %s16 = sphi 0, %s20
      %p17 = scmp.ge.s32.totalorder %s16, 4
      %s23 = sphi 0, %s35
      %s24 = sphi 0, %s31
      %s25 = sphi 0, %s23
      %s26 = sphi 0, %s24
      %s27 = sphi 0, %s25
      %s28 = sphi 0, %s26
      %s40 = sphi 0, %s42
      %s43 = sphi 0, %s40
      %s44 = sphi 0, %s43
      %s60 = sphi 0, %s44
      %s64 = sphi 0, %s64
      %s66 = sphi 0, %s64
      %s67 = sphi 0, %s66
      %s81 = sphi 0, %s67
      %s85 = sphi 0, %s85
      %s87 = sphi 0, %s85
      %s88 = sphi 0, %s87
      %s102 = sphi 0, %s88
      %s106 = sphi 0, %s106
      %s108 = sphi 0, %s106
      %s109 = sphi 0, %s108
      %s123 = sphi 0, %s109
      %s127 = sphi 0, %s127
      %s129 = sphi 0, %s127
      %s130 = sphi 0, %s129
      %s144 = sphi 0, %s130
      %s148 = sphi 0, %s148
      %s150 = sphi 0, %s148
      %s151 = sphi 0, %s150
      %s165 = sphi 0, %s151
      %s169 = sphi 0, %s169
      %s171 = sphi 0, %s169
      %s172 = sphi 0, %s171
      %s186 = sphi 0, %s172
      %s190 = sphi 0, %s190
      %s192 = sphi 0, %s190
      %s193 = sphi 0, %s192
      %s207 = sphi 0, %s193
      %s211 = sphi 0, %s211
      %s213 = sphi 0, %s211
      %s214 = sphi 0, %s213
      %s228 = sphi 0, %s214
      %s236 = sphi 0, %s238
      %s239 = sphi 0, %s236
      %s240 = sphi 0, %s239
      %s256 = sphi 0, %s240
    $region4: #{deeponet_forward.3} parent=1 // loop_header_branch
      %19 = sbr.rel (%p17) target = $region8
    $region5: #{deeponet_forward.3} parent=1 // loop_body
      %s21 = ssub.s32 %s16, 1
      %s22 = ssub.s32 %s16, 2
      %s29 = sadd.s32 1, %s24
      %p30 = scmp.ge.s32.totalorder %s29, 1
      %s31 = scalar_select %p30, 0, %s29
      %s32 = sadd.s32 1, %s23
      %s33 = scalar_select %p30, %s32, %s23
      %p34 = scmp.ge.s32.totalorder %s33, 2
      %s35 = scalar_select %p34, 0, %s33
      %s36 = ssub.s32 %s23, %s35
      %s37 = ssub.s32 %s24, %s31
      %s38 = sor.u32 %s36, %s37
      %p39 = scmp.eq.s32.totalorder %s38, 0
      %s41 = sadd.s32 %s40, 1
      %s42 = scalar_select %p39, %s40, %s41
      %p45 = pneg %p39
      %p46 = scmp.eq.s32.totalorder %s16, 1
      %p47 = por %p45, %p46
      %p48 = scmp.ne.s32.totalorder %s40, %s43
      %p49 = scmp.eq.s32.totalorder %s16, 0
      %p50 = por %p48, %p49
      %p51 = scmp.ne.s32.totalorder %s40, %s43
      %p52 = scmp.eq.s32.totalorder %s21, 1
      %p53 = por %p51, %p52
      %p54 = scmp.ne.s32.totalorder %s43, %s44
      %p55 = scmp.eq.s32.totalorder %s21, 0
      %p56 = por %p54, %p55
      %p57 = scmp.ne.s32.totalorder %s43, %s44
      %p58 = scmp.eq.s32.totalorder %s22, 1
      %p59 = por %p57, %p58
      %p61 = scmp.ne.s32.totalorder %s44, %s60
      %p62 = scmp.eq.s32.totalorder %s22, 0
      %p63 = por %p61, %p62
      %s65 = sadd.s32 %s64, 1
      %p68 = scmp.eq.s32.totalorder %s16, 1
      %p69 = scmp.ne.s32.totalorder %s64, %s66
      %p70 = scmp.eq.s32.totalorder %s16, 0
      %p71 = por %p69, %p70
      %p72 = scmp.ne.s32.totalorder %s64, %s66
      %p73 = scmp.eq.s32.totalorder %s21, 1
      %p74 = por %p72, %p73
      %p75 = scmp.ne.s32.totalorder %s66, %s67
      %p76 = scmp.eq.s32.totalorder %s21, 0
      %p77 = por %p75, %p76
      %p78 = scmp.ne.s32.totalorder %s66, %s67
      %p79 = scmp.eq.s32.totalorder %s22, 1
      %p80 = por %p78, %p79
      %p82 = scmp.ne.s32.totalorder %s67, %s81
      %p83 = scmp.eq.s32.totalorder %s22, 0
      %p84 = por %p82, %p83
      %s86 = sadd.s32 %s85, 1
      %p89 = scmp.eq.s32.totalorder %s16, 1
      %p90 = scmp.ne.s32.totalorder %s85, %s87
      %p91 = scmp.eq.s32.totalorder %s16, 0
      %p92 = por %p90, %p91
      %p93 = scmp.ne.s32.totalorder %s85, %s87
      %p94 = scmp.eq.s32.totalorder %s21, 1
      %p95 = por %p93, %p94
      %p96 = scmp.ne.s32.totalorder %s87, %s88
      %p97 = scmp.eq.s32.totalorder %s21, 0
      %p98 = por %p96, %p97
      %p99 = scmp.ne.s32.totalorder %s87, %s88
      %p100 = scmp.eq.s32.totalorder %s22, 1
      %p101 = por %p99, %p100
      %p103 = scmp.ne.s32.totalorder %s88, %s102
      %p104 = scmp.eq.s32.totalorder %s22, 0
      %p105 = por %p103, %p104
      %s107 = sadd.s32 %s106, 1
      %p110 = scmp.eq.s32.totalorder %s16, 1
      %p111 = scmp.ne.s32.totalorder %s106, %s108
      %p112 = scmp.eq.s32.totalorder %s16, 0
      %p113 = por %p111, %p112
      %p114 = scmp.ne.s32.totalorder %s106, %s108
      %p115 = scmp.eq.s32.totalorder %s21, 1
      %p116 = por %p114, %p115
      %p117 = scmp.ne.s32.totalorder %s108, %s109
      %p118 = scmp.eq.s32.totalorder %s21, 0
      %p119 = por %p117, %p118
      %p120 = scmp.ne.s32.totalorder %s108, %s109
      %p121 = scmp.eq.s32.totalorder %s22, 1
      %p122 = por %p120, %p121
      %p124 = scmp.ne.s32.totalorder %s109, %s123
      %p125 = scmp.eq.s32.totalorder %s22, 0
      %p126 = por %p124, %p125
      %s128 = sadd.s32 %s127, 1
      %p131 = scmp.eq.s32.totalorder %s16, 1
      %p132 = scmp.ne.s32.totalorder %s127, %s129
      %p133 = scmp.eq.s32.totalorder %s16, 0
      %p134 = por %p132, %p133
      %p135 = scmp.ne.s32.totalorder %s127, %s129
      %p136 = scmp.eq.s32.totalorder %s21, 1
      %p137 = por %p135, %p136
      %p138 = scmp.ne.s32.totalorder %s129, %s130
      %p139 = scmp.eq.s32.totalorder %s21, 0
      %p140 = por %p138, %p139
      %p141 = scmp.ne.s32.totalorder %s129, %s130
      %p142 = scmp.eq.s32.totalorder %s22, 1
      %p143 = por %p141, %p142
      %p145 = scmp.ne.s32.totalorder %s130, %s144
      %p146 = scmp.eq.s32.totalorder %s22, 0
      %p147 = por %p145, %p146
      %s149 = sadd.s32 %s148, 1
      %p152 = scmp.eq.s32.totalorder %s16, 1
      %p153 = scmp.ne.s32.totalorder %s148, %s150
      %p154 = scmp.eq.s32.totalorder %s16, 0
      %p155 = por %p153, %p154
      %p156 = scmp.ne.s32.totalorder %s148, %s150
      %p157 = scmp.eq.s32.totalorder %s21, 1
      %p158 = por %p156, %p157
      %p159 = scmp.ne.s32.totalorder %s150, %s151
      %p160 = scmp.eq.s32.totalorder %s21, 0
      %p161 = por %p159, %p160
      %p162 = scmp.ne.s32.totalorder %s150, %s151
      %p163 = scmp.eq.s32.totalorder %s22, 1
      %p164 = por %p162, %p163
      %p166 = scmp.ne.s32.totalorder %s151, %s165
      %p167 = scmp.eq.s32.totalorder %s22, 0
      %p168 = por %p166, %p167
      %s170 = sadd.s32 %s169, 1
      %p173 = scmp.eq.s32.totalorder %s16, 1
      %p174 = scmp.ne.s32.totalorder %s169, %s171
      %p175 = scmp.eq.s32.totalorder %s16, 0
      %p176 = por %p174, %p175
      %p177 = scmp.ne.s32.totalorder %s169, %s171
      %p178 = scmp.eq.s32.totalorder %s21, 1
      %p179 = por %p177, %p178
      %p180 = scmp.ne.s32.totalorder %s171, %s172
      %p181 = scmp.eq.s32.totalorder %s21, 0
      %p182 = por %p180, %p181
      %p183 = scmp.ne.s32.totalorder %s171, %s172
      %p184 = scmp.eq.s32.totalorder %s22, 1
      %p185 = por %p183, %p184
      %p187 = scmp.ne.s32.totalorder %s172, %s186
      %p188 = scmp.eq.s32.totalorder %s22, 0
      %p189 = por %p187, %p188
      %s191 = sadd.s32 %s190, 1
      %p194 = scmp.eq.s32.totalorder %s16, 1
      %p195 = scmp.ne.s32.totalorder %s190, %s192
      %p196 = scmp.eq.s32.totalorder %s16, 0
      %p197 = por %p195, %p196
      %p198 = scmp.ne.s32.totalorder %s190, %s192
      %p199 = scmp.eq.s32.totalorder %s21, 1
      %p200 = por %p198, %p199
      %p201 = scmp.ne.s32.totalorder %s192, %s193
      %p202 = scmp.eq.s32.totalorder %s21, 0
      %p203 = por %p201, %p202
      %p204 = scmp.ne.s32.totalorder %s192, %s193
      %p205 = scmp.eq.s32.totalorder %s22, 1
      %p206 = por %p204, %p205
      %p208 = scmp.ne.s32.totalorder %s193, %s207
      %p209 = scmp.eq.s32.totalorder %s22, 0
      %p210 = por %p208, %p209
      %s212 = sadd.s32 %s211, 1
      %p215 = scmp.eq.s32.totalorder %s16, 1
      %p216 = scmp.ne.s32.totalorder %s211, %s213
      %p217 = scmp.eq.s32.totalorder %s16, 0
      %p218 = por %p216, %p217
      %p219 = scmp.ne.s32.totalorder %s211, %s213
      %p220 = scmp.eq.s32.totalorder %s21, 1
      %p221 = por %p219, %p220
      %p222 = scmp.ne.s32.totalorder %s213, %s214
      %p223 = scmp.eq.s32.totalorder %s21, 0
      %p224 = por %p222, %p223
      %p225 = scmp.ne.s32.totalorder %s213, %s214
      %p226 = scmp.eq.s32.totalorder %s22, 1
      %p227 = por %p225, %p226
      %p229 = scmp.ne.s32.totalorder %s214, %s228
      %p230 = scmp.eq.s32.totalorder %s22, 0
      %p231 = por %p229, %p230
      %s232 = ssub.s32 %s23, %s35
      %s233 = ssub.s32 %s24, %s31
      %s234 = sor.u32 %s232, %s233
      %p235 = scmp.eq.s32.totalorder %s234, 0
      %s237 = sadd.s32 %s236, 1
      %s238 = scalar_select %p235, %s236, %s237
      %p241 = pneg %p235
      %p242 = scmp.eq.s32.totalorder %s16, 1
      %p243 = por %p241, %p242
      %p244 = scmp.ne.s32.totalorder %s236, %s239
      %p245 = scmp.eq.s32.totalorder %s16, 0
      %p246 = por %p244, %p245
      %p247 = scmp.ne.s32.totalorder %s236, %s239
      %p248 = scmp.eq.s32.totalorder %s21, 1
      %p249 = por %p247, %p248
      %p250 = scmp.ne.s32.totalorder %s239, %s240
      %p251 = scmp.eq.s32.totalorder %s21, 0
      %p252 = por %p250, %p251
      %p253 = scmp.ne.s32.totalorder %s239, %s240
      %p254 = scmp.eq.s32.totalorder %s22, 1
      %p255 = por %p253, %p254
      %p257 = scmp.ne.s32.totalorder %s240, %s256
      %p258 = scmp.eq.s32.totalorder %s22, 0
      %p259 = por %p257, %p258
      %p260 = scmp.le.s32.totalorder 1, %s16
      %p261 = scmp.lt.s32.totalorder %s16, 3
      %p262 = pnand %p260, %p261
      %p263 = pneg %p262
      // Predicated region
      $region9: #{deeponet_forward.3} parent=5 // pred_check
        _
      $region10: #{deeponet_forward.3} parent=5 // pred_check_branch
        %265 = sbr.rel (%p262) target = $region12
      $region11: #{deeponet_forward.3} parent=5 // pred_region
        %s266 = ssub.s32 %s16, 1
        // Predicated region
        $region13: #{deeponet_forward.3} parent=11 // pred_check
          %p267 = pneg %p77
        $region14: #{deeponet_forward.3} parent=11 // pred_check_branch
          %269 = sbr.rel (%p267) target = $region16
        $region15: #{deeponet_forward.3} parent=11 // pred_region
          _
        $region16: #{deeponet_forward.3} parent=11 // pred_fallthru
          _
        // Predicated region
        $region17: #{deeponet_forward.3} parent=11 // pred_check
          %p270 = pneg %p98
        $region18: #{deeponet_forward.3} parent=11 // pred_check_branch
          %272 = sbr.rel (%p270) target = $region20
        $region19: #{deeponet_forward.3} parent=11 // pred_region
          %274 = vsyncadd [#allocation3], 0
          %s276 = sshll.u32 %s2, 4
          %s277 = int_to_ptr.vmem [resolvable:$true] %s276
          %279 = dma.vmem_to_smem %s277, 128, [#allocation2], [#allocation3]
        $region20: #{deeponet_forward.3} parent=11 // pred_fallthru
          _
        // Predicated region
        $region21: #{deeponet_forward.3} parent=11 // pred_check
          %p280 = pneg %p119
        $region22: #{deeponet_forward.3} parent=11 // pred_check_branch
          %282 = sbr.rel (%p280) target = $region24
        $region23: #{deeponet_forward.3} parent=11 // pred_region
          _
        $region24: #{deeponet_forward.3} parent=11 // pred_fallthru
          _
        // Predicated region
        $region25: #{deeponet_forward.3} parent=11 // pred_check
          %p283 = pneg %p140
        $region26: #{deeponet_forward.3} parent=11 // pred_check_branch
          %285 = sbr.rel (%p283) target = $region28
        $region27: #{deeponet_forward.3} parent=11 // pred_region
          _
        $region28: #{deeponet_forward.3} parent=11 // pred_fallthru
          _
        // Predicated region
        $region29: #{deeponet_forward.3} parent=11 // pred_check
          %p286 = pneg %p161
        $region30: #{deeponet_forward.3} parent=11 // pred_check_branch
          %288 = sbr.rel (%p286) target = $region32
        $region31: #{deeponet_forward.3} parent=11 // pred_region
          _
        $region32: #{deeponet_forward.3} parent=11 // pred_fallthru
          _
        // Predicated region
        $region33: #{deeponet_forward.3} parent=11 // pred_check
          %p289 = pneg %p182
        $region34: #{deeponet_forward.3} parent=11 // pred_check_branch
          %291 = sbr.rel (%p289) target = $region36
        $region35: #{deeponet_forward.3} parent=11 // pred_region
          _
        $region36: #{deeponet_forward.3} parent=11 // pred_fallthru
          _
        // Predicated region
        $region37: #{deeponet_forward.3} parent=11 // pred_check
          %p292 = pneg %p203
        $region38: #{deeponet_forward.3} parent=11 // pred_check_branch
          %294 = sbr.rel (%p292) target = $region40
        $region39: #{deeponet_forward.3} parent=11 // pred_region
          _
        $region40: #{deeponet_forward.3} parent=11 // pred_fallthru
          _
        // Predicated region
        $region41: #{deeponet_forward.3} parent=11 // pred_check
          %p295 = pneg %p224
        $region42: #{deeponet_forward.3} parent=11 // pred_check_branch
          %297 = sbr.rel (%p295) target = $region44
        $region43: #{deeponet_forward.3} parent=11 // pred_region
          _
        $region44: #{deeponet_forward.3} parent=11 // pred_fallthru
          _
      $region12: #{deeponet_forward.3} parent=5 // pred_fallthru
        _
      %p298 = scmp.lt.s32.totalorder %s16, 2
      // Predicated region
      $region45: #{deeponet_forward.3} parent=5 // pred_check
        %p299 = pneg %p298
      $region46: #{deeponet_forward.3} parent=5 // pred_check_branch
        %301 = sbr.rel (%p299) target = $region48
      $region47: #{deeponet_forward.3} parent=5 // pred_region
        // Predicated region
        $region49: #{deeponet_forward.3} parent=47 // pred_check
          %p302 = pneg %p50
        $region50: #{deeponet_forward.3} parent=47 // pred_check_branch
          %304 = sbr.rel (%p302) target = $region52
        $region51: #{deeponet_forward.3} parent=47 // pred_region
          %s305 = smul.u32 16, %s24
          %p306 = scmp.lt.s32.totalorder %s23, 1
          %s307 = scalar_select %p306, %s23, 1
          %p308 = scmp.lt.s32.totalorder %s305, 15
          %s309 = scalar_select %p308, %s305, 15
          %s310 = smul.addr %s307, 16
          %s311 = sadd.s32 %s309, %s310
          %s312 = smul.addr %s311, 8
          %s313 = scalar_lea.vmem %s0, %s312
          %s314 = smul.u32 16, %s24
        $region52: #{deeponet_forward.3} parent=47 // pred_fallthru
          _
      $region48: #{deeponet_forward.3} parent=5 // pred_fallthru
        _
      %p315 = scmp.le.s32.totalorder 1, %s16
      %p316 = scmp.lt.s32.totalorder %s16, 3
      %p317 = pnand %p315, %p316
      %p318 = pneg %p317
      // Predicated region
      $region53: #{deeponet_forward.3} parent=5 // pred_check
        _
      $region54: #{deeponet_forward.3} parent=5 // pred_check_branch
        %320 = sbr.rel (%p317) target = $region56
      $region55: #{deeponet_forward.3} parent=5 // pred_region
        %s321 = ssub.s32 %s16, 1
        // Predicated region
        $region57: #{deeponet_forward.3} parent=55 // pred_check
          %p322 = pneg %p98
        $region58: #{deeponet_forward.3} parent=55 // pred_check_branch
          %324 = sbr.rel (%p322) target = $region60
        $region59: #{deeponet_forward.3} parent=55 // pred_region
          %326 = dma.done [#allocation3], 128
        $region60: #{deeponet_forward.3} parent=55 // pred_fallthru
          _
        %327 = sfence
        %s328 = smul.u32 16, %s26
        %p329 = scmp.lt.s32.totalorder %s25, 1
        %s330 = scalar_select %p329, %s25, 1
        %p331 = scmp.lt.s32.totalorder %s328, 15
        %s332 = scalar_select %p331, %s328, 15
        %s333 = smul.addr %s330, 16
        %s334 = sadd.s32 %s332, %s333
        %s335 = smul.addr %s334, 8
        %s336 = scalar_lea.vmem %s0, %s335
        %p337 = pneg %p56
        %p338 = pneg %p53
        %p339 = pneg %p77
        %p340 = pneg %p74
        %p341 = pneg %p98
        %p342 = pneg %p95
        %p343 = pneg %p119
        %p344 = pneg %p116
        %p345 = pneg %p140
        %p346 = pneg %p137
        %p347 = pneg %p161
        %p348 = pneg %p158
        %p349 = pneg %p182
        %p350 = pneg %p179
        %p351 = pneg %p203
        %p352 = pneg %p200
        %p353 = pneg %p224
        %p354 = pneg %p221
        %p355 = pneg %p252
        %p356 = pneg %p249
        %p357 = scmp.lt.s32.totalorder %s25, 1
        %s358 = scalar_select %p357, %s25, 1
        %p359 = scmp.lt.s32.totalorder %s26, 0
        %s360 = scalar_select %p359, %s26, 0
        %s361 = sadd.s32 %s360, %s358
        %s362 = scalar_lea.vmem %s9, %s361
        %s363 = smul.u32 16, %s26
        %p364 = scmp.lt.s32.totalorder %s25, 1
        %s365 = scalar_select %p364, %s25, 1
        %p366 = scmp.lt.s32.totalorder %s363, 15
        %s367 = scalar_select %p366, %s363, 15
        %s368 = smul.addr %s365, 16
        %s369 = sadd.s32 %s367, %s368
        %s370 = smul.addr %s369, 8
        %s371 = scalar_lea.vmem %s0, %s370
        %s372 = smul.u32 16, %s26
        %p373 = scmp.lt.s32.totalorder %s25, 1
        %s374 = scalar_select %p373, %s25, 1
        %p375 = scmp.lt.s32.totalorder %s26, 0
        %s376 = scalar_select %p375, %s26, 0
        %s377 = sadd.s32 %s376, %s374
        %s378 = scalar_lea.vmem %s9, %s377
        %v379 = vld [vmem:[%s371] sm:$0xff]
        %v380 = vld [vmem:[%s371 + $0x8] sm:$0xff]
        %v381 = vld [vmem:[%s371 + $0x10] sm:$0xff]
        %v382 = vld [vmem:[%s371 + $0x18] sm:$0xff]
        %v383 = vld [vmem:[%s371 + $0x20] sm:$0xff]
        %v384 = vld [vmem:[%s371 + $0x28] sm:$0xff]
        %v385 = vld [vmem:[%s371 + $0x30] sm:$0xff]
        %v386 = vld [vmem:[%s371 + $0x38] sm:$0xff]
        %v387 = vld [vmem:[%s371 + $0x40] sm:$0xff]
        %v388 = vld [vmem:[%s371 + $0x48] sm:$0xff]
        %v389 = vld [vmem:[%s371 + $0x50] sm:$0xff]
        %v390 = vld [vmem:[%s371 + $0x58] sm:$0xff]
        %v391 = vld [vmem:[%s371 + $0x60] sm:$0xff]
        %v392 = vld [vmem:[%s371 + $0x68] sm:$0xff]
        %v393 = vld [vmem:[%s371 + $0x70] sm:$0xff]
        %v394 = vld [vmem:[%s371 + $0x78] sm:$0xff]
        %v395 = vld [vmem:[%s3] sm:$0x3]
        %397 = vset.pattern.permute.xlu0 0
        %398 = vperm.xlu0 %397, %v379
        %v399 = vpop.permute.xlu0 %398
        %402 = vset.pattern.permute.xlu0 0
        %403 = vperm.xlu0 %402, %v380
        %v404 = vpop.permute.xlu0 %403
        %407 = vset.pattern.permute.xlu0 0
        %408 = vperm.xlu0 %407, %v381
        %v409 = vpop.permute.xlu0 %408
        %412 = vset.pattern.permute.xlu0 0
        %413 = vperm.xlu0 %412, %v382
        %v414 = vpop.permute.xlu0 %413
        %417 = vset.pattern.permute.xlu0 0
        %418 = vperm.xlu0 %417, %v383
        %v419 = vpop.permute.xlu0 %418
        %422 = vset.pattern.permute.xlu0 0
        %423 = vperm.xlu0 %422, %v384
        %v424 = vpop.permute.xlu0 %423
        %427 = vset.pattern.permute.xlu0 0
        %428 = vperm.xlu0 %427, %v385
        %v429 = vpop.permute.xlu0 %428
        %432 = vset.pattern.permute.xlu0 0
        %433 = vperm.xlu0 %432, %v386
        %v434 = vpop.permute.xlu0 %433
        %437 = vset.pattern.permute.xlu0 0
        %438 = vperm.xlu0 %437, %v387
        %v439 = vpop.permute.xlu0 %438
        %442 = vset.pattern.permute.xlu0 0
        %443 = vperm.xlu0 %442, %v388
        %v444 = vpop.permute.xlu0 %443
        %447 = vset.pattern.permute.xlu0 0
        %448 = vperm.xlu0 %447, %v389
        %v449 = vpop.permute.xlu0 %448
        %452 = vset.pattern.permute.xlu0 0
        %453 = vperm.xlu0 %452, %v390
        %v454 = vpop.permute.xlu0 %453
        %457 = vset.pattern.permute.xlu0 0
        %458 = vperm.xlu0 %457, %v391
        %v459 = vpop.permute.xlu0 %458
        %462 = vset.pattern.permute.xlu0 0
        %463 = vperm.xlu0 %462, %v392
        %v464 = vpop.permute.xlu0 %463
        %467 = vset.pattern.permute.xlu0 0
        %468 = vperm.xlu0 %467, %v393
        %v469 = vpop.permute.xlu0 %468
        %472 = vset.pattern.permute.xlu0 0
        %473 = vperm.xlu0 %472, %v394
        %v474 = vpop.permute.xlu0 %473
        %v476 = vperm.slane %v395, 0
        %v477 = vmul.f32 %v399, %v476
        %v478 = vmul.f32 %v404, %v476
        %v479 = vmul.f32 %v409, %v476
        %v480 = vmul.f32 %v414, %v476
        %v481 = vmul.f32 %v419, %v476
        %v482 = vmul.f32 %v424, %v476
        %v483 = vmul.f32 %v429, %v476
        %v484 = vmul.f32 %v434, %v476
        %v485 = vmul.f32 %v439, %v476
        %v486 = vmul.f32 %v444, %v476
        %v487 = vmul.f32 %v449, %v476
        %v488 = vmul.f32 %v454, %v476
        %v489 = vmul.f32 %v459, %v476
        %v490 = vmul.f32 %v464, %v476
        %v491 = vmul.f32 %v469, %v476
        %v492 = vmul.f32 %v474, %v476
        %493 = vset.pattern.permute.xlu0 1
        %494 = vperm.xlu0 %493, %v379
        %v495 = vpop.permute.xlu0 %494
        %497 = vset.pattern.permute.xlu0 1
        %498 = vperm.xlu0 %497, %v380
        %v499 = vpop.permute.xlu0 %498
        %501 = vset.pattern.permute.xlu0 1
        %502 = vperm.xlu0 %501, %v381
        %v503 = vpop.permute.xlu0 %502
        %505 = vset.pattern.permute.xlu0 1
        %506 = vperm.xlu0 %505, %v382
        %v507 = vpop.permute.xlu0 %506
        %509 = vset.pattern.permute.xlu0 1
        %510 = vperm.xlu0 %509, %v383
        %v511 = vpop.permute.xlu0 %510
        %513 = vset.pattern.permute.xlu0 1
        %514 = vperm.xlu0 %513, %v384
        %v515 = vpop.permute.xlu0 %514
        %517 = vset.pattern.permute.xlu0 1
        %518 = vperm.xlu0 %517, %v385
        %v519 = vpop.permute.xlu0 %518
        %521 = vset.pattern.permute.xlu0 1
        %522 = vperm.xlu0 %521, %v386
        %v523 = vpop.permute.xlu0 %522
        %525 = vset.pattern.permute.xlu0 1
        %526 = vperm.xlu0 %525, %v387
        %v527 = vpop.permute.xlu0 %526
        %529 = vset.pattern.permute.xlu0 1
        %530 = vperm.xlu0 %529, %v388
        %v531 = vpop.permute.xlu0 %530
        %533 = vset.pattern.permute.xlu0 1
        %534 = vperm.xlu0 %533, %v389
        %v535 = vpop.permute.xlu0 %534
        %537 = vset.pattern.permute.xlu0 1
        %538 = vperm.xlu0 %537, %v390
        %v539 = vpop.permute.xlu0 %538
        %541 = vset.pattern.permute.xlu0 1
        %542 = vperm.xlu0 %541, %v391
        %v543 = vpop.permute.xlu0 %542
        %545 = vset.pattern.permute.xlu0 1
        %546 = vperm.xlu0 %545, %v392
        %v547 = vpop.permute.xlu0 %546
        %549 = vset.pattern.permute.xlu0 1
        %550 = vperm.xlu0 %549, %v393
        %v551 = vpop.permute.xlu0 %550
        %553 = vset.pattern.permute.xlu0 1
        %554 = vperm.xlu0 %553, %v394
        %v555 = vpop.permute.xlu0 %554
        %v557 = vperm.slane %v395, 1
        %v558 = vmul.f32 %v495, %v557
        %v559 = vmul.f32 %v499, %v557
        %v560 = vmul.f32 %v503, %v557
        %v561 = vmul.f32 %v507, %v557
        %v562 = vmul.f32 %v511, %v557
        %v563 = vmul.f32 %v515, %v557
        %v564 = vmul.f32 %v519, %v557
        %v565 = vmul.f32 %v523, %v557
        %v566 = vmul.f32 %v527, %v557
        %v567 = vmul.f32 %v531, %v557
        %v568 = vmul.f32 %v535, %v557
        %v569 = vmul.f32 %v539, %v557
        %v570 = vmul.f32 %v543, %v557
        %v571 = vmul.f32 %v547, %v557
        %v572 = vmul.f32 %v551, %v557
        %v573 = vmul.f32 %v555, %v557
        %v574 = vadd.f32 %v477, %v558
        %v575 = vadd.f32 %v478, %v559
        %v576 = vadd.f32 %v479, %v560
        %v577 = vadd.f32 %v480, %v561
        %v578 = vadd.f32 %v481, %v562
        %v579 = vadd.f32 %v482, %v563
        %v580 = vadd.f32 %v483, %v564
        %v581 = vadd.f32 %v484, %v565
        %v582 = vadd.f32 %v485, %v566
        %v583 = vadd.f32 %v486, %v567
        %v584 = vadd.f32 %v487, %v568
        %v585 = vadd.f32 %v488, %v569
        %v586 = vadd.f32 %v489, %v570
        %v587 = vadd.f32 %v490, %v571
        %v588 = vadd.f32 %v491, %v572
        %v589 = vadd.f32 %v492, %v573
        %v590 = vld [vmem:[%s4] sm:$0x1]
        %v592 = vperm.slane %v590, 0
        %v594 = vadd.f32 %v574, %v592
        %v595 = vadd.f32 %v575, %v592
        %v596 = vadd.f32 %v576, %v592
        %v597 = vadd.f32 %v577, %v592
        %v598 = vadd.f32 %v578, %v592
        %v599 = vadd.f32 %v579, %v592
        %v600 = vadd.f32 %v580, %v592
        %v601 = vadd.f32 %v581, %v592
        %v602 = vadd.f32 %v582, %v592
        %v603 = vadd.f32 %v583, %v592
        %v604 = vadd.f32 %v584, %v592
        %v605 = vadd.f32 %v585, %v592
        %v606 = vadd.f32 %v586, %v592
        %v607 = vadd.f32 %v587, %v592
        %v608 = vadd.f32 %v588, %v592
        %v609 = vadd.f32 %v589, %v592
        %v610 = vtanh.pop %v594
        %v611 = vtanh.pop %v595
        %v612 = vtanh.pop %v596
        %v613 = vtanh.pop %v597
        %v614 = vtanh.pop %v598
        %v615 = vtanh.pop %v599
        %v616 = vtanh.pop %v600
        %v617 = vtanh.pop %v601
        %v618 = vtanh.pop %v602
        %v619 = vtanh.pop %v603
        %v620 = vtanh.pop %v604
        %v621 = vtanh.pop %v605
        %v622 = vtanh.pop %v606
        %v623 = vtanh.pop %v607
        %v624 = vtanh.pop %v608
        %v625 = vtanh.pop %v609
        %v626 = vpack.c.bf16 %v611, %v610
        %v627 = vpack.c.bf16 %v613, %v612
        %v628 = vpack.c.bf16 %v615, %v614
        %v629 = vpack.c.bf16 %v617, %v616
        %v630 = vpack.c.bf16 %v619, %v618
        %v631 = vpack.c.bf16 %v621, %v620
        %v632 = vpack.c.bf16 %v623, %v622
        %v633 = vpack.c.bf16 %v625, %v624
        %v634 = vld [vmem:[%s5] sm:$0xf]
        %v635 = vld [vmem:[%s5 + $0x4] sm:$0xf]
        %v636 = vld [vmem:[%s5 + $0x8] sm:$0xf]
        %v637 = vld [vmem:[%s5 + $0xc] sm:$0xf]
        %v638 = vld [vmem:[%s5 + $0x10] sm:$0xf]
        %v639 = vld [vmem:[%s5 + $0x14] sm:$0xf]
        %v640 = vld [vmem:[%s5 + $0x18] sm:$0xf]
        %v641 = vld [vmem:[%s5 + $0x1c] sm:$0xf]
        %v642 = vld [vmem:[%s5 + $0x20] sm:$0xf]
        %v643 = vld [vmem:[%s5 + $0x24] sm:$0xf]
        %v644 = vld [vmem:[%s5 + $0x28] sm:$0xf]
        %v645 = vld [vmem:[%s5 + $0x2c] sm:$0xf]
        %v646 = vld [vmem:[%s5 + $0x30] sm:$0xf]
        %v647 = vld [vmem:[%s5 + $0x34] sm:$0xf]
        %v648 = vld [vmem:[%s5 + $0x38] sm:$0xf]
        %v649 = vld [vmem:[%s5 + $0x3c] sm:$0xf]
        %v650 = vld [vmem:[%s6] sm:$0x1]
        %v652 = vperm.slane %v650, 0
        %v670 = vunpack.c.l.b16 %v634
        %v671 = vunpack.c.l.b16 %v635
        %v672 = vunpack.c.l.b16 %v636
        %v673 = vunpack.c.l.b16 %v637
        %v674 = vunpack.c.l.b16 %v638
        %v675 = vunpack.c.l.b16 %v639
        %v676 = vunpack.c.l.b16 %v640
        %v677 = vunpack.c.l.b16 %v641
        %v678 = vunpack.c.l.b16 %v642
        %v679 = vunpack.c.l.b16 %v643
        %v680 = vunpack.c.l.b16 %v644
        %v681 = vunpack.c.l.b16 %v645
        %v682 = vunpack.c.l.b16 %v646
        %v683 = vunpack.c.l.b16 %v647
        %v684 = vunpack.c.l.b16 %v648
        %v685 = vunpack.c.l.b16 %v649
        %v686 = vpack.c.b16 %v671, %v670
        %v687 = vpack.c.b16 %v673, %v672
        %v688 = vpack.c.b16 %v675, %v674
        %v689 = vpack.c.b16 %v677, %v676
        %v690 = vpack.c.b16 %v679, %v678
        %v691 = vpack.c.b16 %v681, %v680
        %v692 = vpack.c.b16 %v683, %v682
        %v693 = vpack.c.b16 %v685, %v684
        %702 = vmatpush.bf16.msra.mxu0 %v693
        %703 = vmatpush.bf16.msra.mxu0 %v692
        %704 = vmatpush.bf16.msra.mxu0 %v691
        %705 = vmatpush.bf16.msra.mxu0 %v690
        %706 = vmatpush.bf16.msra.mxu0 %v689
        %707 = vmatpush.bf16.msra.mxu0 %v688
        %708 = vmatpush.bf16.msra.mxu0 %v687
        %709 = vmatpush.bf16.msra.mxu0 %v686
        %710 = vmatmul.bf16.gmra.mxu0 %v626
        %v711 = vpop.f32.mrf.mxu0
        %v712 = vadd.f32 %v652, %v711
        %v713 = vpop.f32.mrf.mxu0
        %v714 = vadd.f32 %v652, %v713
        %715 = vmatmul.bf16.gmra.mxu0 %v627
        %v716 = vpop.f32.mrf.mxu0
        %v717 = vadd.f32 %v652, %v716
        %v718 = vpop.f32.mrf.mxu0
        %v719 = vadd.f32 %v652, %v718
        %720 = vmatmul.bf16.gmra.mxu0 %v628
        %v721 = vpop.f32.mrf.mxu0
        %v722 = vadd.f32 %v652, %v721
        %v723 = vpop.f32.mrf.mxu0
        %v724 = vadd.f32 %v652, %v723
        %725 = vmatmul.bf16.gmra.mxu0 %v629
        %v726 = vpop.f32.mrf.mxu0
        %v727 = vadd.f32 %v652, %v726
        %v728 = vpop.f32.mrf.mxu0
        %v729 = vadd.f32 %v652, %v728
        %730 = vmatmul.bf16.gmra.mxu0 %v630
        %v731 = vpop.f32.mrf.mxu0
        %v732 = vadd.f32 %v652, %v731
        %v733 = vpop.f32.mrf.mxu0
        %v734 = vadd.f32 %v652, %v733
        %735 = vmatmul.bf16.gmra.mxu0 %v631
        %v736 = vpop.f32.mrf.mxu0
        %v737 = vadd.f32 %v652, %v736
        %v738 = vpop.f32.mrf.mxu0
        %v739 = vadd.f32 %v652, %v738
        %740 = vmatmul.bf16.gmra.mxu0 %v632
        %v741 = vpop.f32.mrf.mxu0
        %v742 = vadd.f32 %v652, %v741
        %v743 = vpop.f32.mrf.mxu0
        %v744 = vadd.f32 %v652, %v743
        %745 = vmatmul.bf16.gmra.mxu0 %v633
        %v746 = vpop.f32.mrf.mxu0
        %v747 = vadd.f32 %v652, %v746
        %v748 = vpop.f32.mrf.mxu0
        %v749 = vadd.f32 %v652, %v748
        %750 = vdwg.mxu0
        %v751 = vtanh.pop %v712
        %v752 = vtanh.pop %v714
        %v753 = vtanh.pop %v717
        %v754 = vtanh.pop %v719
        %v755 = vtanh.pop %v722
        %v756 = vtanh.pop %v724
        %v757 = vtanh.pop %v727
        %v758 = vtanh.pop %v729
        %v759 = vtanh.pop %v732
        %v760 = vtanh.pop %v734
        %v761 = vtanh.pop %v737
        %v762 = vtanh.pop %v739
        %v763 = vtanh.pop %v742
        %v764 = vtanh.pop %v744
        %v765 = vtanh.pop %v747
        %v766 = vtanh.pop %v749
        %v767 = vpack.c.bf16 %v752, %v751
        %v768 = vpack.c.bf16 %v754, %v753
        %v769 = vpack.c.bf16 %v756, %v755
        %v770 = vpack.c.bf16 %v758, %v757
        %v771 = vpack.c.bf16 %v760, %v759
        %v772 = vpack.c.bf16 %v762, %v761
        %v773 = vpack.c.bf16 %v764, %v763
        %v774 = vpack.c.bf16 %v766, %v765
        %v775 = vld [vmem:[%s7] sm:$0xf]
        %v776 = vld [vmem:[%s7 + $0x4] sm:$0xf]
        %v777 = vld [vmem:[%s7 + $0x8] sm:$0xf]
        %v778 = vld [vmem:[%s7 + $0xc] sm:$0xf]
        %v779 = vld [vmem:[%s7 + $0x10] sm:$0xf]
        %v780 = vld [vmem:[%s7 + $0x14] sm:$0xf]
        %v781 = vld [vmem:[%s7 + $0x18] sm:$0xf]
        %v782 = vld [vmem:[%s7 + $0x1c] sm:$0xf]
        %v783 = vld [vmem:[%s7 + $0x20] sm:$0xf]
        %v784 = vld [vmem:[%s7 + $0x24] sm:$0xf]
        %v785 = vld [vmem:[%s7 + $0x28] sm:$0xf]
        %v786 = vld [vmem:[%s7 + $0x2c] sm:$0xf]
        %v787 = vld [vmem:[%s7 + $0x30] sm:$0xf]
        %v788 = vld [vmem:[%s7 + $0x34] sm:$0xf]
        %v789 = vld [vmem:[%s7 + $0x38] sm:$0xf]
        %v790 = vld [vmem:[%s7 + $0x3c] sm:$0xf]
        %v791 = vld [vmem:[%s8] sm:$0x1]
        %v793 = vperm.slane %v791, 0
        %v811 = vunpack.c.l.b16 %v775
        %v812 = vunpack.c.l.b16 %v776
        %v813 = vunpack.c.l.b16 %v777
        %v814 = vunpack.c.l.b16 %v778
        %v815 = vunpack.c.l.b16 %v779
        %v816 = vunpack.c.l.b16 %v780
        %v817 = vunpack.c.l.b16 %v781
        %v818 = vunpack.c.l.b16 %v782
        %v819 = vunpack.c.l.b16 %v783
        %v820 = vunpack.c.l.b16 %v784
        %v821 = vunpack.c.l.b16 %v785
        %v822 = vunpack.c.l.b16 %v786
        %v823 = vunpack.c.l.b16 %v787
        %v824 = vunpack.c.l.b16 %v788
        %v825 = vunpack.c.l.b16 %v789
        %v826 = vunpack.c.l.b16 %v790
        %v827 = vpack.c.b16 %v812, %v811
        %v828 = vpack.c.b16 %v814, %v813
        %v829 = vpack.c.b16 %v816, %v815
        %v830 = vpack.c.b16 %v818, %v817
        %v831 = vpack.c.b16 %v820, %v819
        %v832 = vpack.c.b16 %v822, %v821
        %v833 = vpack.c.b16 %v824, %v823
        %v834 = vpack.c.b16 %v826, %v825
        %843 = vmatpush.bf16.msra.mxu0 %v834
        %844 = vmatpush.bf16.msra.mxu0 %v833
        %845 = vmatpush.bf16.msra.mxu0 %v832
        %846 = vmatpush.bf16.msra.mxu0 %v831
        %847 = vmatpush.bf16.msra.mxu0 %v830
        %848 = vmatpush.bf16.msra.mxu0 %v829
        %849 = vmatpush.bf16.msra.mxu0 %v828
        %850 = vmatpush.bf16.msra.mxu0 %v827
        %851 = vmatmul.bf16.gmra.mxu0 %v767
        %v852 = vpop.f32.mrf.mxu0
        %v853 = vadd.f32 %v793, %v852
        %v854 = vpop.f32.mrf.mxu0
        %v855 = vadd.f32 %v793, %v854
        %856 = vmatmul.bf16.gmra.mxu0 %v768
        %v857 = vpop.f32.mrf.mxu0
        %v858 = vadd.f32 %v793, %v857
        %v859 = vpop.f32.mrf.mxu0
        %v860 = vadd.f32 %v793, %v859
        %861 = vmatmul.bf16.gmra.mxu0 %v769
        %v862 = vpop.f32.mrf.mxu0
        %v863 = vadd.f32 %v793, %v862
        %v864 = vpop.f32.mrf.mxu0
        %v865 = vadd.f32 %v793, %v864
        %866 = vmatmul.bf16.gmra.mxu0 %v770
        %v867 = vpop.f32.mrf.mxu0
        %v868 = vadd.f32 %v793, %v867
        %v869 = vpop.f32.mrf.mxu0
        %v870 = vadd.f32 %v793, %v869
        %871 = vmatmul.bf16.gmra.mxu0 %v771
        %v872 = vpop.f32.mrf.mxu0
        %v873 = vadd.f32 %v793, %v872
        %v874 = vpop.f32.mrf.mxu0
        %v875 = vadd.f32 %v793, %v874
        %876 = vmatmul.bf16.gmra.mxu0 %v772
        %v877 = vpop.f32.mrf.mxu0
        %v878 = vadd.f32 %v793, %v877
        %v879 = vpop.f32.mrf.mxu0
        %v880 = vadd.f32 %v793, %v879
        %881 = vmatmul.bf16.gmra.mxu0 %v773
        %v882 = vpop.f32.mrf.mxu0
        %v883 = vadd.f32 %v793, %v882
        %v884 = vpop.f32.mrf.mxu0
        %v885 = vadd.f32 %v793, %v884
        %886 = vmatmul.bf16.gmra.mxu0 %v774
        %v887 = vpop.f32.mrf.mxu0
        %v888 = vadd.f32 %v793, %v887
        %v889 = vpop.f32.mrf.mxu0
        %v890 = vadd.f32 %v793, %v889
        %891 = vdwg.mxu0
        %v892 = vtanh.pop %v853
        %v893 = vtanh.pop %v855
        %v894 = vtanh.pop %v858
        %v895 = vtanh.pop %v860
        %v896 = vtanh.pop %v863
        %v897 = vtanh.pop %v865
        %v898 = vtanh.pop %v868
        %v899 = vtanh.pop %v870
        %v900 = vtanh.pop %v873
        %v901 = vtanh.pop %v875
        %v902 = vtanh.pop %v878
        %v903 = vtanh.pop %v880
        %v904 = vtanh.pop %v883
        %v905 = vtanh.pop %v885
        %v906 = vtanh.pop %v888
        %v907 = vtanh.pop %v890
        %s908 = scalar_lea.vmem %s1, %s25
        %v909 = vld [vmem:[%s908] sm:$0x1]
        %v910 = vperm.slane %v909, 0
        %v911 = vmul.f32 %v892, %v910
        %v912 = vmul.f32 %v893, %v910
        %v913 = vmul.f32 %v894, %v910
        %v914 = vmul.f32 %v895, %v910
        %v915 = vmul.f32 %v896, %v910
        %v916 = vmul.f32 %v897, %v910
        %v917 = vmul.f32 %v898, %v910
        %v918 = vmul.f32 %v899, %v910
        %v919 = vmul.f32 %v900, %v910
        %v920 = vmul.f32 %v901, %v910
        %v921 = vmul.f32 %v902, %v910
        %v922 = vmul.f32 %v903, %v910
        %v923 = vmul.f32 %v904, %v910
        %v924 = vmul.f32 %v905, %v910
        %v925 = vmul.f32 %v906, %v910
        %v926 = vmul.f32 %v907, %v910
        %927 = vadd.xlane.f32.xlu0 %v911
        %v928 = vpop.xlane.xlu0 %927
        %929 = vadd.xlane.f32.xlu0 %v912
        %v930 = vpop.xlane.xlu0 %929
        %931 = vadd.xlane.f32.xlu0 %v913
        %v932 = vpop.xlane.xlu0 %931
        %933 = vadd.xlane.f32.xlu0 %v914
        %v934 = vpop.xlane.xlu0 %933
        %935 = vadd.xlane.f32.xlu0 %v915
        %v936 = vpop.xlane.xlu0 %935
        %937 = vadd.xlane.f32.xlu0 %v916
        %v938 = vpop.xlane.xlu0 %937
        %939 = vadd.xlane.f32.xlu0 %v917
        %v940 = vpop.xlane.xlu0 %939
        %941 = vadd.xlane.f32.xlu0 %v918
        %v942 = vpop.xlane.xlu0 %941
        %943 = vadd.xlane.f32.xlu0 %v919
        %v944 = vpop.xlane.xlu0 %943
        %945 = vadd.xlane.f32.xlu0 %v920
        %v946 = vpop.xlane.xlu0 %945
        %947 = vadd.xlane.f32.xlu0 %v921
        %v948 = vpop.xlane.xlu0 %947
        %949 = vadd.xlane.f32.xlu0 %v922
        %v950 = vpop.xlane.xlu0 %949
        %951 = vadd.xlane.f32.xlu0 %v923
        %v952 = vpop.xlane.xlu0 %951
        %953 = vadd.xlane.f32.xlu0 %v924
        %v954 = vpop.xlane.xlu0 %953
        %955 = vadd.xlane.f32.xlu0 %v925
        %v956 = vpop.xlane.xlu0 %955
        %957 = vadd.xlane.f32.xlu0 %v926
        %v958 = vpop.xlane.xlu0 %957
        %s959 = smul.u32 %s25, 128
        %s960 = sld [smem:[#allocation2 + %s959]]
        %v961 = vstv %s960
        %v962 = vadd.f32 %v928, %v961
        %v963 = vadd.f32 %v930, %v961
        %v964 = vadd.f32 %v932, %v961
        %v965 = vadd.f32 %v934, %v961
        %v966 = vadd.f32 %v936, %v961
        %v967 = vadd.f32 %v938, %v961
        %v968 = vadd.f32 %v940, %v961
        %v969 = vadd.f32 %v942, %v961
        %v970 = vadd.f32 %v944, %v961
        %v971 = vadd.f32 %v946, %v961
        %v972 = vadd.f32 %v948, %v961
        %v973 = vadd.f32 %v950, %v961
        %v974 = vadd.f32 %v952, %v961
        %v975 = vadd.f32 %v954, %v961
        %v976 = vadd.f32 %v956, %v961
        %v977 = vadd.f32 %v958, %v961
        %v994 = vlaneseq
        %v995 = vand.u32 %v994, 127
        %v996 = vperm.slane %v962, %v995
        %v997 = vadd.s32 %v995, 4294967288
        %v998 = vperm.slane %v963, %v997
        %vm999 = vcmask 130112
        %v1000 = vsel %vm999, %v998, %v996
        %v1001 = vadd.s32 %v995, 4294967280
        %v1002 = vperm.slane %v964, %v1001
        %vm1003 = vcmask 195712
        %v1004 = vsel %vm1003, %v1002, %v1000
        %v1005 = vadd.s32 %v995, 4294967272
        %v1006 = vperm.slane %v965, %v1005
        %vm1007 = vcmask 261312
        %v1008 = vsel %vm1007, %v1006, %v1004
        %v1009 = vadd.s32 %v995, 4294967264
        %v1010 = vperm.slane %v966, %v1009
        %vm1011 = vcmask 326912
        %v1012 = vsel %vm1011, %v1010, %v1008
        %v1013 = vadd.s32 %v995, 4294967256
        %v1014 = vperm.slane %v967, %v1013
        %vm1015 = vcmask 392512
        %v1016 = vsel %vm1015, %v1014, %v1012
        %v1017 = vadd.s32 %v995, 4294967248
        %v1018 = vperm.slane %v968, %v1017
        %vm1019 = vcmask 458112
        %v1020 = vsel %vm1019, %v1018, %v1016
        %v1021 = vadd.s32 %v995, 4294967240
        %v1022 = vperm.slane %v969, %v1021
        %vm1023 = vcmask 523712
        %v1024 = vsel %vm1023, %v1022, %v1020
        %v1025 = vadd.s32 %v995, 4294967232
        %v1026 = vperm.slane %v970, %v1025
        %vm1027 = vcmask 589312
        %v1028 = vsel %vm1027, %v1026, %v1024
        %v1029 = vadd.s32 %v995, 4294967224
        %v1030 = vperm.slane %v971, %v1029
        %vm1031 = vcmask 654912
        %v1032 = vsel %vm1031, %v1030, %v1028
        %v1033 = vadd.s32 %v995, 4294967216
        %v1034 = vperm.slane %v972, %v1033
        %vm1035 = vcmask 720512
        %v1036 = vsel %vm1035, %v1034, %v1032
        %v1037 = vadd.s32 %v995, 4294967208
        %v1038 = vperm.slane %v973, %v1037
        %vm1039 = vcmask 786112
        %v1040 = vsel %vm1039, %v1038, %v1036
        %v1041 = vadd.s32 %v995, 4294967200
        %v1042 = vperm.slane %v974, %v1041
        %vm1043 = vcmask 851712
        %v1044 = vsel %vm1043, %v1042, %v1040
        %v1045 = vadd.s32 %v995, 4294967192
        %v1046 = vperm.slane %v975, %v1045
        %vm1047 = vcmask 917312
        %v1048 = vsel %vm1047, %v1046, %v1044
        %v1049 = vadd.s32 %v995, 4294967184
        %v1050 = vperm.slane %v976, %v1049
        %vm1051 = vcmask 982912
        %v1052 = vsel %vm1051, %v1050, %v1048
        %v1053 = vadd.s32 %v995, 4294967176
        %v1054 = vperm.slane %v977, %v1053
        %vm1055 = vcmask 1048512
        %v1056 = vsel %vm1055, %v1054, %v1052
        %1058 = vst [vmem:[%s378] sm:$0x1] %v1056
        %p1059 = scmp.lt.s32.totalorder %s25, 1
        %s1060 = scalar_select %p1059, %s25, 1
        %p1061 = scmp.lt.s32.totalorder %s26, 0
        %s1062 = scalar_select %p1061, %s26, 0
        %s1063 = sadd.s32 %s1062, %s1060
        %s1064 = scalar_lea.vmem %s9, %s1063
        // Predicated region
        $region61: #{deeponet_forward.3} parent=55 // pred_check
          %p1065 = pneg %p249
        $region62: #{deeponet_forward.3} parent=55 // pred_check_branch
          %1067 = sbr.rel (%p1065) target = $region64
        $region63: #{deeponet_forward.3} parent=55 // pred_region
          _
        $region64: #{deeponet_forward.3} parent=55 // pred_fallthru
          _
      $region56: #{deeponet_forward.3} parent=5 // pred_fallthru
        _
      %p1068 = scmp.le.s32.totalorder 2, %s16
      // Predicated region
      $region65: #{deeponet_forward.3} parent=5 // pred_check
        %p1069 = pneg %p1068
      $region66: #{deeponet_forward.3} parent=5 // pred_check_branch
        %1071 = sbr.rel (%p1069) target = $region68
      $region67: #{deeponet_forward.3} parent=5 // pred_region
        %s1072 = ssub.s32 %s16, 2
        // Predicated region
        $region69: #{deeponet_forward.3} parent=67 // pred_check
          %p1073 = pneg %p255
        $region70: #{deeponet_forward.3} parent=67 // pred_check_branch
          %1075 = sbr.rel (%p1073) target = $region72
        $region71: #{deeponet_forward.3} parent=67 // pred_region
          %p1076 = scmp.lt.s32.totalorder %s27, 1
          %s1077 = scalar_select %p1076, %s27, 1
          %p1078 = scmp.lt.s32.totalorder %s28, 0
          %s1079 = scalar_select %p1078, %s28, 0
          %s1080 = sadd.s32 %s1079, %s1077
          %s1081 = scalar_lea.vmem %s9, %s1080
        $region72: #{deeponet_forward.3} parent=67 // pred_fallthru
          _
      $region68: #{deeponet_forward.3} parent=5 // pred_fallthru
        _
    $region6: #{deeponet_forward.3} parent=1 // loop_footer
      %s20 = sadd.s32 1, %s16
    $region7: #{deeponet_forward.3} parent=1 // loop_footer_branch
      %15 = sbr.rel target = $region3
    $region8: #{deeponet_forward.3} parent=1 // loop_exit
      _
    %1082 = vsyncpa [#allocation3], 1
    %s1083 = scalar_lea.sflag [#allocation3], 1
    %1084 = vsyncpa %s1083, 1

// kernel: deeponet_forward.2
$region0: #{deeponet_forward.2}
  #allocation0 [shape = 'u32[]', space=smem, size = 0x4, offset = 0x4, fixed_abs, tag = 'smem constant byte address 0x4 - core index']
  #allocation1 [shape = 'u32[72,128]{1,0:T(1,128)}', space=vmem, size = 0x9000, scoped, tag = 'internal scratch']
  #allocation2 [shape = 'f32[1,1]{1,0:T(1,128)S(6)}', space=smem, size = 0x200, scoped, tag = 'scoped memory for deeponet_forward.2']
  %s0 = inlined_call_operand.vmem [shape: f32[8,16], index: 0, kind: input, shape index: {}]
  %s1 = inlined_call_operand.vmem [shape: bf16[16,128], index: 1, kind: input, shape index: {}]
  %s2 = inlined_call_operand.vmem [shape: f32[1,128], index: 2, kind: input, shape index: {}]
  %s3 = inlined_call_operand.vmem [shape: bf16[128,128], index: 3, kind: input, shape index: {}]
  %s4 = inlined_call_operand.vmem [shape: f32[1,128], index: 4, kind: input, shape index: {}]
  %s5 = inlined_call_operand.vmem [shape: bf16[128,128], index: 5, kind: input, shape index: {}]
  %s6 = inlined_call_operand.vmem [shape: f32[1,128], index: 6, kind: input, shape index: {}]
  %s7 = inlined_call_operand.vmem [shape: bf16[128,256], index: 7, kind: input, shape index: {}]
  %s8 = inlined_call_operand.vmem [shape: f32[1,256], index: 8, kind: input, shape index: {}]
  %s9 = inlined_call_operand.vmem [shape: bf16[256,128], index: 9, kind: input, shape index: {}]
  %s10 = inlined_call_operand.vmem [shape: f32[1,256], index: 10, kind: input, shape index: {}]
  %s11 = inlined_call_operand.<no memory space> [shape: f32[1,1], index: 11, kind: input, shape index: {}]
  %s12 = inlined_call_operand.vmem [shape: f32[8,128], index: 12, kind: output, shape index: {0}]
  %s13 = inlined_call_operand.vmem [shape: f32[8,1], index: 13, kind: output, shape index: {1}]
  %14 = xla_tuple %s12, %s13
  %s15 = sld [smem:[#allocation0]]
  $region66: #{deeponet_forward.2} parent=0
    _
  %s17 = ssub.s32 1, %s15
  %s18 = scalar_select 0, %s17, %s15
  %19 = sst [smem:[#allocation2]] %s11
  // Predicated region
  $region2: #{deeponet_forward.2} parent=0 // pred_check
    _
  $region3: #{deeponet_forward.2} parent=0 // pred_check_branch
    %21 = sbr.rel (0) target = $region5
  $region4: #{deeponet_forward.2} parent=0 // pred_region
    _
  $region5: #{deeponet_forward.2} parent=0 // pred_fallthru
    _
  // Predicated region
  $region6: #{deeponet_forward.2} parent=0 // pred_check
    _
  $region7: #{deeponet_forward.2} parent=0 // pred_check_branch
    %23 = sbr.rel (0) target = $region9
  $region8: #{deeponet_forward.2} parent=0 // pred_region
    _
  $region9: #{deeponet_forward.2} parent=0 // pred_fallthru
    _
  // Predicated region
  $region10: #{deeponet_forward.2} parent=0 // pred_check
    _
  $region11: #{deeponet_forward.2} parent=0 // pred_check_branch
    %25 = sbr.rel (0) target = $region13
  $region12: #{deeponet_forward.2} parent=0 // pred_region
    _
  $region13: #{deeponet_forward.2} parent=0 // pred_fallthru
    _
  // Predicated region
  $region14: #{deeponet_forward.2} parent=0 // pred_check
    _
  $region15: #{deeponet_forward.2} parent=0 // pred_check_branch
    %27 = sbr.rel (0) target = $region17
  $region16: #{deeponet_forward.2} parent=0 // pred_region
    _
  $region17: #{deeponet_forward.2} parent=0 // pred_fallthru
    _
  // Predicated region
  $region18: #{deeponet_forward.2} parent=0 // pred_check
    _
  $region19: #{deeponet_forward.2} parent=0 // pred_check_branch
    %29 = sbr.rel (0) target = $region21
  $region20: #{deeponet_forward.2} parent=0 // pred_region
    _
  $region21: #{deeponet_forward.2} parent=0 // pred_fallthru
    _
  // Predicated region
  $region22: #{deeponet_forward.2} parent=0 // pred_check
    _
  $region23: #{deeponet_forward.2} parent=0 // pred_check_branch
    %31 = sbr.rel (0) target = $region25
  $region24: #{deeponet_forward.2} parent=0 // pred_region
    _
  $region25: #{deeponet_forward.2} parent=0 // pred_fallthru
    _
  // Predicated region
  $region26: #{deeponet_forward.2} parent=0 // pred_check
    _
  $region27: #{deeponet_forward.2} parent=0 // pred_check_branch
    %33 = sbr.rel (0) target = $region29
  $region28: #{deeponet_forward.2} parent=0 // pred_region
    _
  $region29: #{deeponet_forward.2} parent=0 // pred_fallthru
    _
  // Predicated region
  $region30: #{deeponet_forward.2} parent=0 // pred_check
    _
  $region31: #{deeponet_forward.2} parent=0 // pred_check_branch
    %35 = sbr.rel (0) target = $region33
  $region32: #{deeponet_forward.2} parent=0 // pred_region
    _
  $region33: #{deeponet_forward.2} parent=0 // pred_fallthru
    _
  // Predicated region
  $region34: #{deeponet_forward.2} parent=0 // pred_check
    _
  $region35: #{deeponet_forward.2} parent=0 // pred_check_branch
    %37 = sbr.rel (0) target = $region37
  $region36: #{deeponet_forward.2} parent=0 // pred_region
    _
  $region37: #{deeponet_forward.2} parent=0 // pred_fallthru
    _
  // Predicated region
  $region38: #{deeponet_forward.2} parent=0 // pred_check
    _
  $region39: #{deeponet_forward.2} parent=0 // pred_check_branch
    %39 = sbr.rel (0) target = $region41
  $region40: #{deeponet_forward.2} parent=0 // pred_region
    _
  $region41: #{deeponet_forward.2} parent=0 // pred_fallthru
    _
  // Predicated region
  $region42: #{deeponet_forward.2} parent=0 // pred_check
    _
  $region43: #{deeponet_forward.2} parent=0 // pred_check_branch
    %41 = sbr.rel (0) target = $region45
  $region44: #{deeponet_forward.2} parent=0 // pred_region
    _
  $region45: #{deeponet_forward.2} parent=0 // pred_fallthru
    _
  // Predicated region
  $region46: #{deeponet_forward.2} parent=0 // pred_check
    _
  $region47: #{deeponet_forward.2} parent=0 // pred_check_branch
    %43 = sbr.rel (0) target = $region49
  $region48: #{deeponet_forward.2} parent=0 // pred_region
    _
  $region49: #{deeponet_forward.2} parent=0 // pred_fallthru
    _
  %v45 = vld [vmem:[%s0] sm:$0xff]
  %v46 = vpack.c.bf16 %v45, %v45
  %v47 = vld [vmem:[%s1] sm:$0xf]
  %v48 = vld [vmem:[%s1 + $0x4] sm:$0xf]
  %v49 = vld [vmem:[%s2] sm:$0x1]
  %v51 = vperm.slane %v49, 0
  %v55 = vunpack.c.l.b16 %v47
  %v56 = vunpack.c.l.b16 %v48
  %v57 = vpack.c.b16 %v56, %v55
  %vm59 = vcmask 130048
  %v61 = vsel %vm59, %v46, 0
  %63 = vmatpush.bf16.msra.mxu0 0
  %64 = vmatpush.bf16.msra.mxu0 0
  %65 = vmatpush.bf16.msra.mxu0 0
  %66 = vmatpush.bf16.msra.mxu0 0
  %67 = vmatpush.bf16.msra.mxu0 0
  %68 = vmatpush.bf16.msra.mxu0 0
  %69 = vmatpush.bf16.msra.mxu0 0
  %70 = vmatpush.bf16.msra.mxu0 %v57
  %71 = vmatmul.bf16.gmra.mxu0 %v61
  %v72 = vpop.f32.mrf.mxu0
  %v73 = vadd.f32 %v51, %v72
  %v74 = vpop.f32.mrf.mxu0
  %75 = vdwg.mxu0
  %v76 = vtanh.pop %v73
  %v77 = vpack.c.bf16 %v76, %v76
  %v78 = vld [vmem:[%s3] sm:$0xf]
  %v79 = vld [vmem:[%s3 + $0x4] sm:$0xf]
  %v80 = vld [vmem:[%s3 + $0x8] sm:$0xf]
  %v81 = vld [vmem:[%s3 + $0xc] sm:$0xf]
  %v82 = vld [vmem:[%s3 + $0x10] sm:$0xf]
  %v83 = vld [vmem:[%s3 + $0x14] sm:$0xf]
  %v84 = vld [vmem:[%s3 + $0x18] sm:$0xf]
  %v85 = vld [vmem:[%s3 + $0x1c] sm:$0xf]
  %v86 = vld [vmem:[%s3 + $0x20] sm:$0xf]
  %v87 = vld [vmem:[%s3 + $0x24] sm:$0xf]
  %v88 = vld [vmem:[%s3 + $0x28] sm:$0xf]
  %v89 = vld [vmem:[%s3 + $0x2c] sm:$0xf]
  %v90 = vld [vmem:[%s3 + $0x30] sm:$0xf]
  %v91 = vld [vmem:[%s3 + $0x34] sm:$0xf]
  %v92 = vld [vmem:[%s3 + $0x38] sm:$0xf]
  %v93 = vld [vmem:[%s3 + $0x3c] sm:$0xf]
  %v94 = vld [vmem:[%s4] sm:$0x1]
  %v96 = vperm.slane %v94, 0
  %v114 = vunpack.c.l.b16 %v78
  %v115 = vunpack.c.l.b16 %v79
  %v116 = vunpack.c.l.b16 %v80
  %v117 = vunpack.c.l.b16 %v81
  %v118 = vunpack.c.l.b16 %v82
  %v119 = vunpack.c.l.b16 %v83
  %v120 = vunpack.c.l.b16 %v84
  %v121 = vunpack.c.l.b16 %v85
  %v122 = vunpack.c.l.b16 %v86
  %v123 = vunpack.c.l.b16 %v87
  %v124 = vunpack.c.l.b16 %v88
  %v125 = vunpack.c.l.b16 %v89
  %v126 = vunpack.c.l.b16 %v90
  %v127 = vunpack.c.l.b16 %v91
  %v128 = vunpack.c.l.b16 %v92
  %v129 = vunpack.c.l.b16 %v93
  %v130 = vpack.c.b16 %v115, %v114
  %v131 = vpack.c.b16 %v117, %v116
  %v132 = vpack.c.b16 %v119, %v118
  %v133 = vpack.c.b16 %v121, %v120
  %v134 = vpack.c.b16 %v123, %v122
  %v135 = vpack.c.b16 %v125, %v124
  %v136 = vpack.c.b16 %v127, %v126
  %v137 = vpack.c.b16 %v129, %v128
  %146 = vmatpush.bf16.msra.mxu0 %v137
  %147 = vmatpush.bf16.msra.mxu0 %v136
  %148 = vmatpush.bf16.msra.mxu0 %v135
  %149 = vmatpush.bf16.msra.mxu0 %v134
  %150 = vmatpush.bf16.msra.mxu0 %v133
  %151 = vmatpush.bf16.msra.mxu0 %v132
  %152 = vmatpush.bf16.msra.mxu0 %v131
  %153 = vmatpush.bf16.msra.mxu0 %v130
  %154 = vmatmul.bf16.gmra.mxu0 %v77
  %v155 = vpop.f32.mrf.mxu0
  %v156 = vadd.f32 %v96, %v155
  %v157 = vpop.f32.mrf.mxu0
  %158 = vdwg.mxu0
  %v159 = vtanh.pop %v156
  %v160 = vpack.c.bf16 %v159, %v159
  %v161 = vld [vmem:[%s5] sm:$0xf]
  %v162 = vld [vmem:[%s5 + $0x4] sm:$0xf]
  %v163 = vld [vmem:[%s5 + $0x8] sm:$0xf]
  %v164 = vld [vmem:[%s5 + $0xc] sm:$0xf]
  %v165 = vld [vmem:[%s5 + $0x10] sm:$0xf]
  %v166 = vld [vmem:[%s5 + $0x14] sm:$0xf]
  %v167 = vld [vmem:[%s5 + $0x18] sm:$0xf]
  %v168 = vld [vmem:[%s5 + $0x1c] sm:$0xf]
  %v169 = vld [vmem:[%s5 + $0x20] sm:$0xf]
  %v170 = vld [vmem:[%s5 + $0x24] sm:$0xf]
  %v171 = vld [vmem:[%s5 + $0x28] sm:$0xf]
  %v172 = vld [vmem:[%s5 + $0x2c] sm:$0xf]
  %v173 = vld [vmem:[%s5 + $0x30] sm:$0xf]
  %v174 = vld [vmem:[%s5 + $0x34] sm:$0xf]
  %v175 = vld [vmem:[%s5 + $0x38] sm:$0xf]
  %v176 = vld [vmem:[%s5 + $0x3c] sm:$0xf]
  %v177 = vld [vmem:[%s6] sm:$0x1]
  %v179 = vperm.slane %v177, 0
  %v197 = vunpack.c.l.b16 %v161
  %v198 = vunpack.c.l.b16 %v162
  %v199 = vunpack.c.l.b16 %v163
  %v200 = vunpack.c.l.b16 %v164
  %v201 = vunpack.c.l.b16 %v165
  %v202 = vunpack.c.l.b16 %v166
  %v203 = vunpack.c.l.b16 %v167
  %v204 = vunpack.c.l.b16 %v168
  %v205 = vunpack.c.l.b16 %v169
  %v206 = vunpack.c.l.b16 %v170
  %v207 = vunpack.c.l.b16 %v171
  %v208 = vunpack.c.l.b16 %v172
  %v209 = vunpack.c.l.b16 %v173
  %v210 = vunpack.c.l.b16 %v174
  %v211 = vunpack.c.l.b16 %v175
  %v212 = vunpack.c.l.b16 %v176
  %v213 = vpack.c.b16 %v198, %v197
  %v214 = vpack.c.b16 %v200, %v199
  %v215 = vpack.c.b16 %v202, %v201
  %v216 = vpack.c.b16 %v204, %v203
  %v217 = vpack.c.b16 %v206, %v205
  %v218 = vpack.c.b16 %v208, %v207
  %v219 = vpack.c.b16 %v210, %v209
  %v220 = vpack.c.b16 %v212, %v211
  %229 = vmatpush.bf16.msra.mxu0 %v220
  %230 = vmatpush.bf16.msra.mxu0 %v219
  %231 = vmatpush.bf16.msra.mxu0 %v218
  %232 = vmatpush.bf16.msra.mxu0 %v217
  %233 = vmatpush.bf16.msra.mxu0 %v216
  %234 = vmatpush.bf16.msra.mxu0 %v215
  %235 = vmatpush.bf16.msra.mxu0 %v214
  %236 = vmatpush.bf16.msra.mxu0 %v213
  %237 = vmatmul.bf16.gmra.mxu0 %v160
  %v238 = vpop.f32.mrf.mxu0
  %v239 = vadd.f32 %v179, %v238
  %v240 = vpop.f32.mrf.mxu0
  %241 = vdwg.mxu0
  %v242 = vtanh.pop %v239
  %v243 = vpack.c.bf16 %v242, %v242
  %v244 = vld [vmem:[%s7] sm:$0xff]
  %v245 = vld [vmem:[%s7 + $0x8] sm:$0xff]
  %v246 = vld [vmem:[%s7 + $0x10] sm:$0xff]
  %v247 = vld [vmem:[%s7 + $0x18] sm:$0xff]
  %v248 = vld [vmem:[%s7 + $0x20] sm:$0xff]
  %v249 = vld [vmem:[%s7 + $0x28] sm:$0xff]
  %v250 = vld [vmem:[%s7 + $0x30] sm:$0xff]
  %v251 = vld [vmem:[%s7 + $0x38] sm:$0xff]
  %v252 = vld [vmem:[%s7 + $0x40] sm:$0xff]
  %v253 = vld [vmem:[%s7 + $0x48] sm:$0xff]
  %v254 = vld [vmem:[%s7 + $0x50] sm:$0xff]
  %v255 = vld [vmem:[%s7 + $0x58] sm:$0xff]
  %v256 = vld [vmem:[%s7 + $0x60] sm:$0xff]
  %v257 = vld [vmem:[%s7 + $0x68] sm:$0xff]
  %v258 = vld [vmem:[%s7 + $0x70] sm:$0xff]
  %v259 = vld [vmem:[%s7 + $0x78] sm:$0xff]
  %v260 = vld [vmem:[%s8] sm:$0x3]
  %v262 = vperm.slane %v260, 0
  %v263 = vperm.slane %v260, 1
  %v282 = vunpack.c.l.b16 %v244
  %v283 = vunpack.c.h.b16 %v244
  %v284 = vunpack.c.l.b16 %v245
  %v285 = vunpack.c.h.b16 %v245
  %v286 = vunpack.c.l.b16 %v246
  %v287 = vunpack.c.h.b16 %v246
  %v288 = vunpack.c.l.b16 %v247
  %v289 = vunpack.c.h.b16 %v247
  %v290 = vunpack.c.l.b16 %v248
  %v291 = vunpack.c.h.b16 %v248
  %v292 = vunpack.c.l.b16 %v249
  %v293 = vunpack.c.h.b16 %v249
  %v294 = vunpack.c.l.b16 %v250
  %v295 = vunpack.c.h.b16 %v250
  %v296 = vunpack.c.l.b16 %v251
  %v297 = vunpack.c.h.b16 %v251
  %v298 = vunpack.c.l.b16 %v252
  %v299 = vunpack.c.h.b16 %v252
  %v300 = vunpack.c.l.b16 %v253
  %v301 = vunpack.c.h.b16 %v253
  %v302 = vunpack.c.l.b16 %v254
  %v303 = vunpack.c.h.b16 %v254
  %v304 = vunpack.c.l.b16 %v255
  %v305 = vunpack.c.h.b16 %v255
  %v306 = vunpack.c.l.b16 %v256
  %v307 = vunpack.c.h.b16 %v256
  %v308 = vunpack.c.l.b16 %v257
  %v309 = vunpack.c.h.b16 %v257
  %v310 = vunpack.c.l.b16 %v258
  %v311 = vunpack.c.h.b16 %v258
  %v312 = vunpack.c.l.b16 %v259
  %v313 = vunpack.c.h.b16 %v259
  %v314 = vpack.c.b16 %v284, %v282
  %v315 = vpack.c.b16 %v285, %v283
  %v316 = vpack.c.b16 %v288, %v286
  %v317 = vpack.c.b16 %v289, %v287
  %v318 = vpack.c.b16 %v292, %v290
  %v319 = vpack.c.b16 %v293, %v291
  %v320 = vpack.c.b16 %v296, %v294
  %v321 = vpack.c.b16 %v297, %v295
  %v322 = vpack.c.b16 %v300, %v298
  %v323 = vpack.c.b16 %v301, %v299
  %v324 = vpack.c.b16 %v304, %v302
  %v325 = vpack.c.b16 %v305, %v303
  %v326 = vpack.c.b16 %v308, %v306
  %v327 = vpack.c.b16 %v309, %v307
  %v328 = vpack.c.b16 %v312, %v310
  %v329 = vpack.c.b16 %v313, %v311
  %346 = vmatpush.bf16.msra.mxu0 %v328
  %347 = vmatpush.bf16.msra.mxu0 %v326
  %348 = vmatpush.bf16.msra.mxu0 %v324
  %349 = vmatpush.bf16.msra.mxu0 %v322
  %350 = vmatpush.bf16.msra.mxu0 %v320
  %351 = vmatpush.bf16.msra.mxu0 %v318
  %352 = vmatpush.bf16.msra.mxu0 %v316
  %353 = vmatpush.bf16.msra.mxu0 %v314
  %354 = vmatmul.bf16.gmra.mxu0 %v243
  %v355 = vpop.f32.mrf.mxu0
  %v356 = vadd.f32 %v262, %v355
  %v357 = vpop.f32.mrf.mxu0
  %358 = vdwg.mxu0
  %359 = vmatpush.bf16.msra.mxu0 %v329
  %360 = vmatpush.bf16.msra.mxu0 %v327
  %361 = vmatpush.bf16.msra.mxu0 %v325
  %362 = vmatpush.bf16.msra.mxu0 %v323
  %363 = vmatpush.bf16.msra.mxu0 %v321
  %364 = vmatpush.bf16.msra.mxu0 %v319
  %365 = vmatpush.bf16.msra.mxu0 %v317
  %366 = vmatpush.bf16.msra.mxu0 %v315
  %367 = vmatmul.bf16.gmra.mxu0 %v243
  %v368 = vpop.f32.mrf.mxu0
  %v369 = vadd.f32 %v263, %v368
  %v370 = vpop.f32.mrf.mxu0
  %371 = vdwg.mxu0
  %v372 = vpack.c.bf16 %v356, %v356
  %v373 = vpack.c.bf16 %v369, %v369
  %v374 = vld [vmem:[%s9] sm:$0xf]
  %v375 = vld [vmem:[%s9 + $0x4] sm:$0xf]
  %v376 = vld [vmem:[%s9 + $0x8] sm:$0xf]
  %v377 = vld [vmem:[%s9 + $0xc] sm:$0xf]
  %v378 = vld [vmem:[%s9 + $0x10] sm:$0xf]
  %v379 = vld [vmem:[%s9 + $0x14] sm:$0xf]
  %v380 = vld [vmem:[%s9 + $0x18] sm:$0xf]
  %v381 = vld [vmem:[%s9 + $0x1c] sm:$0xf]
  %v382 = vld [vmem:[%s9 + $0x20] sm:$0xf]
  %v383 = vld [vmem:[%s9 + $0x24] sm:$0xf]
  %v384 = vld [vmem:[%s9 + $0x28] sm:$0xf]
  %v385 = vld [vmem:[%s9 + $0x2c] sm:$0xf]
  %v386 = vld [vmem:[%s9 + $0x30] sm:$0xf]
  %v387 = vld [vmem:[%s9 + $0x34] sm:$0xf]
  %v388 = vld [vmem:[%s9 + $0x38] sm:$0xf]
  %v389 = vld [vmem:[%s9 + $0x3c] sm:$0xf]
  %v390 = vld [vmem:[%s9 + $0x40] sm:$0xf]
  %v391 = vld [vmem:[%s9 + $0x44] sm:$0xf]
  %v392 = vld [vmem:[%s9 + $0x48] sm:$0xf]
  %v393 = vld [vmem:[%s9 + $0x4c] sm:$0xf]
  %v394 = vld [vmem:[%s9 + $0x50] sm:$0xf]
  %v395 = vld [vmem:[%s9 + $0x54] sm:$0xf]
  %v396 = vld [vmem:[%s9 + $0x58] sm:$0xf]
  %v397 = vld [vmem:[%s9 + $0x5c] sm:$0xf]
  %v398 = vld [vmem:[%s9 + $0x60] sm:$0xf]
  %v399 = vld [vmem:[%s9 + $0x64] sm:$0xf]
  %v400 = vld [vmem:[%s9 + $0x68] sm:$0xf]
  %v401 = vld [vmem:[%s9 + $0x6c] sm:$0xf]
  %v402 = vld [vmem:[%s9 + $0x70] sm:$0xf]
  %v403 = vld [vmem:[%s9 + $0x74] sm:$0xf]
  %v404 = vld [vmem:[%s9 + $0x78] sm:$0xf]
  %v405 = vld [vmem:[%s9 + $0x7c] sm:$0xf]
  %v438 = vunpack.c.l.b16 %v374
  %v439 = vunpack.c.l.b16 %v375
  %v440 = vunpack.c.l.b16 %v376
  %v441 = vunpack.c.l.b16 %v377
  %v442 = vunpack.c.l.b16 %v378
  %v443 = vunpack.c.l.b16 %v379
  %v444 = vunpack.c.l.b16 %v380
  %v445 = vunpack.c.l.b16 %v381
  %v446 = vunpack.c.l.b16 %v382
  %v447 = vunpack.c.l.b16 %v383
  %v448 = vunpack.c.l.b16 %v384
  %v449 = vunpack.c.l.b16 %v385
  %v450 = vunpack.c.l.b16 %v386
  %v451 = vunpack.c.l.b16 %v387
  %v452 = vunpack.c.l.b16 %v388
  %v453 = vunpack.c.l.b16 %v389
  %v454 = vunpack.c.l.b16 %v390
  %v455 = vunpack.c.l.b16 %v391
  %v456 = vunpack.c.l.b16 %v392
  %v457 = vunpack.c.l.b16 %v393
  %v458 = vunpack.c.l.b16 %v394
  %v459 = vunpack.c.l.b16 %v395
  %v460 = vunpack.c.l.b16 %v396
  %v461 = vunpack.c.l.b16 %v397
  %v462 = vunpack.c.l.b16 %v398
  %v463 = vunpack.c.l.b16 %v399
  %v464 = vunpack.c.l.b16 %v400
  %v465 = vunpack.c.l.b16 %v401
  %v466 = vunpack.c.l.b16 %v402
  %v467 = vunpack.c.l.b16 %v403
  %v468 = vunpack.c.l.b16 %v404
  %v469 = vunpack.c.l.b16 %v405
  %v470 = vpack.c.b16 %v439, %v438
  %v471 = vpack.c.b16 %v441, %v440
  %v472 = vpack.c.b16 %v443, %v442
  %v473 = vpack.c.b16 %v445, %v444
  %v474 = vpack.c.b16 %v447, %v446
  %v475 = vpack.c.b16 %v449, %v448
  %v476 = vpack.c.b16 %v451, %v450
  %v477 = vpack.c.b16 %v453, %v452
  %v478 = vpack.c.b16 %v455, %v454
  %v479 = vpack.c.b16 %v457, %v456
  %v480 = vpack.c.b16 %v459, %v458
  %v481 = vpack.c.b16 %v461, %v460
  %v482 = vpack.c.b16 %v463, %v462
  %v483 = vpack.c.b16 %v465, %v464
  %v484 = vpack.c.b16 %v467, %v466
  %v485 = vpack.c.b16 %v469, %v468
  %502 = vmatpush.bf16.msra.mxu0 %v477
  %503 = vmatpush.bf16.msra.mxu0 %v476
  %504 = vmatpush.bf16.msra.mxu0 %v475
  %505 = vmatpush.bf16.msra.mxu0 %v474
  %506 = vmatpush.bf16.msra.mxu0 %v473
  %507 = vmatpush.bf16.msra.mxu0 %v472
  %508 = vmatpush.bf16.msra.mxu0 %v471
  %509 = vmatpush.bf16.msra.mxu0 %v470
  %510 = vmatmul.bf16.gmra.mxu0 %v372
  %v511 = vpop.f32.mrf.mxu0
  %v512 = vadd.f32 0.0, %v511
  %v513 = vpop.f32.mrf.mxu0
  %514 = vdwg.mxu0
  %515 = vmatpush.bf16.msra.mxu0 %v485
  %516 = vmatpush.bf16.msra.mxu0 %v484
  %517 = vmatpush.bf16.msra.mxu0 %v483
  %518 = vmatpush.bf16.msra.mxu0 %v482
  %519 = vmatpush.bf16.msra.mxu0 %v481
  %520 = vmatpush.bf16.msra.mxu0 %v480
  %521 = vmatpush.bf16.msra.mxu0 %v479
  %522 = vmatpush.bf16.msra.mxu0 %v478
  %523 = vmatmul.bf16.gmra.mxu0 %v373
  %v524 = vpop.f32.mrf.mxu0
  %v525 = vadd.f32 %v512, %v524
  %v526 = vpop.f32.mrf.mxu0
  %527 = vdwg.mxu0
  %528 = vst [vmem:[%s12] sm:$0xff] %v525
  %v529 = vld [vmem:[%s10] sm:$0x3]
  %v531 = vperm.slane %v529, 0
  %v532 = vperm.slane %v529, 1
  %v535 = vmul.f32 %v356, %v531
  %v536 = vmul.f32 %v369, %v532
  %v537 = vadd.f32 %v535, %v536
  %538 = vadd.xlane.f32.xlu0 %v537
  %v539 = vpop.xlane.xlu0 %538
  %s540 = sld [smem:[#allocation2]]
  %v541 = vstv %s540
  %v542 = vadd.f32 %v539, %v541
  %vm543 = vcmask 7168
  %544 = vst.msk [vmem:[%s13] sm:$0xff] %vm543, %v542
  // Predicated region
  $region50: #{deeponet_forward.2} parent=0 // pred_check
    _
  $region51: #{deeponet_forward.2} parent=0 // pred_check_branch
    %546 = sbr.rel (0) target = $region53
  $region52: #{deeponet_forward.2} parent=0 // pred_region
    _
  $region53: #{deeponet_forward.2} parent=0 // pred_fallthru
    _
  // Predicated region
  $region54: #{deeponet_forward.2} parent=0 // pred_check
    _
  $region55: #{deeponet_forward.2} parent=0 // pred_check_branch
    %548 = sbr.rel (0) target = $region57
  $region56: #{deeponet_forward.2} parent=0 // pred_region
    _
  $region57: #{deeponet_forward.2} parent=0 // pred_fallthru
    _
  // Predicated region
  $region58: #{deeponet_forward.2} parent=0 // pred_check
    _
  $region59: #{deeponet_forward.2} parent=0 // pred_check_branch
    %550 = sbr.rel (0) target = $region61
  $region60: #{deeponet_forward.2} parent=0 // pred_region
    _
  $region61: #{deeponet_forward.2} parent=0 // pred_fallthru
    _
  // Predicated region
  $region62: #{deeponet_forward.2} parent=0 // pred_check
    _
  $region63: #{deeponet_forward.2} parent=0 // pred_check_branch
    %552 = sbr.rel (0) target = $region65
  $region64: #{deeponet_forward.2} parent=0 // pred_region
    _
  $region65: #{deeponet_forward.2} parent=0 // pred_fallthru
    _

</llo_original>
